<compile_context>
chip_gen: v5e
topology: v5e:2x2
jax: 0.10.0
libtpu: 0.0.40
codegen_flags: <defaults>
</compile_context>

<pallas_src>
import math
import jax
import jax.numpy as jnp
from jax.experimental import pallas as pl
from jax.experimental.pallas import tpu as pltpu

# ---- config (small synthetic RoBERTa; the real module loads pretrained weights) ----
BATCH = 2
SEQ = 8
TOKENS = BATCH * SEQ
HIDDEN = 32            # logical hidden size
HEADS = 4
HEAD_DIM = HIDDEN // HEADS
FFN = 64               # logical FFN size
LAYERS = 2
VOCAB = 100
MAX_POS = 40
N_CLASSES = 3
PAD_ID = 1
LN_EPS = 1e-5
SCALE = 1.0 / math.sqrt(HEAD_DIM)

# padded (lane-dense) storage sizes -- multiples of 128 lanes
HP = 128               # padded hidden
FP = 128               # padded FFN
NCP = 128              # padded classifier output (sliced to N_CLASSES in the wrapper)
N_LVEC = 10            # rows of the packed per-layer bias/LN slab
INV_HIDDEN = 1.0 / HIDDEN


# ---------------- in-kernel helpers (traced inside the Pallas kernel) ----------------

def _layernorm(x, g, b):
    # x is exactly zero in padded lanes and g/b are zero there too, so padded lanes stay zero.
    # Normalize over the LOGICAL width (32), not the padded 128 lanes.
    mean = jnp.sum(x, axis=-1, keepdims=True) * INV_HIDDEN
    var = jnp.maximum(jnp.sum(x * x, axis=-1, keepdims=True) * INV_HIDDEN - mean * mean, 0.0)
    return (x - mean) * jax.lax.rsqrt(var + LN_EPS) * g + b


def _gelu(x):
    # tanh-approx GELU; HF RoBERTa uses exact erf GELU (synthetic weights here).
    # TODO(synk): switch to exact erf GELU for parity testing against pretrained weights.
    return 0.5 * x * (1.0 + jnp.tanh(0.7978845608028654 * (x + 0.044715 * x * x * x)))


# ---------------- fused encoder + pooler + classifier kernel (no grid) ----------------

def roberta_kernel(amask_ref, emb_ref, gvec_ref, lvec_ref, lw_ref, hw_ref, out_ref):
    amask = amask_ref[...]                        # (TOKENS, TOKENS) additive mask, f32
    gvec = gvec_ref[...]                          # (4, HP): emb_ln_g, emb_ln_b, pool_b, out_b

    # embedding LayerNorm (embeddings already padded to HP lanes; pad lanes are zero)
    x = _layernorm(emb_ref[...], gvec[0:1, :], gvec[1:2, :])      # (TOKENS, HP) f32

    for l in range(LAYERS):                       # unrolled: no grid, no per-step DMA overhead
        w = lw_ref[l]                             # (HP, 6*HP) bf16  [wq|wk|wv|wo|w1|w2]
        vec = lvec_ref[l]                         # (N_LVEC, HP) f32

        # ---- self-attention: fused QKV projection (one MXU push, 384 lanes out) ----
        x_b = x.astype(jnp.bfloat16)              # single bf16 cast per matmul LHS
        qkv = jnp.dot(x_b, w[:, 0:3 * HP], preferred_element_type=jnp.float32)
        q = qkv[:, 0 * HP:1 * HP] + vec[0:1, :]
        k = qkv[:, 1 * HP:2 * HP] + vec[1:2, :]
        v = qkv[:, 2 * HP:3 * HP] + vec[2:3, :]

        # Batch is folded into the token axis; amask is block-diagonal over examples and
        # drops padded keys, so a flat (TOKENS x TOKENS) softmax == per-example softmax.
        ctx_parts = []
        for h in range(HEADS):                    # short unrolled loop of plain 2-D MXU dots
            sl = slice(h * HEAD_DIM, (h + 1) * HEAD_DIM)
            s = jnp.dot(q[:, sl], k[:, sl].T,
                        preferred_element_type=jnp.float32) * SCALE + amask
            s = s - jnp.max(s, axis=-1, keepdims=True)            # stable softmax (f32)
            p = jnp.exp(s)
            p = p * pl.reciprocal(jnp.sum(p, axis=-1, keepdims=True), approx=True)
            ctx_parts.append(jnp.dot(p, v[:, sl], preferred_element_type=jnp.float32))
        # pad the context back out to HP lanes (wo rows >= HIDDEN are zero anyway)
        ctx = jnp.concatenate(
            ctx_parts + [jnp.zeros((TOKENS, HP - HIDDEN), jnp.float32)], axis=-1)

        attn = jnp.dot(ctx.astype(jnp.bfloat16), w[:, 3 * HP:4 * HP],
                       preferred_element_type=jnp.float32) + vec[3:4, :]
        h1 = _layernorm(attn + x, vec[4:5, :], vec[5:6, :])

        # ---- feed-forward ----
        ff = _gelu(jnp.dot(h1.astype(jnp.bfloat16), w[:, 4 * HP:5 * HP],
                           preferred_element_type=jnp.float32) + vec[6:7, :])
        ff2 = jnp.dot(ff.astype(jnp.bfloat16), w[:, 5 * HP:6 * HP],
                      preferred_element_type=jnp.float32) + vec[7:8, :]
        x = _layernorm(ff2 + h1, vec[8:9, :], vec[9:10, :])

    # ---- pooler (tanh on CLS) + dropout(identity at inference) + classifier head ----
    cls = x.reshape(BATCH, SEQ, HP)[:, 0, :]      # CLS rows 0, SEQ, 2*SEQ, ... in one slice
    hw = hw_ref[...]                              # (HP, 2*HP) bf16  [wp | wout]
    pooled = jnp.tanh(jnp.dot(cls.astype(jnp.bfloat16), hw[:, 0:HP],
                              preferred_element_type=jnp.float32) + gvec[2:3, :])
    # nn.Dropout(p=0.5) is the identity at inference time.
    # TODO(synk): training-mode stochastic dropout (pltpu.prng_*) not implemented.
    logits = jnp.dot(pooled.astype(jnp.bfloat16), hw[:, HP:2 * HP],
                     preferred_element_type=jnp.float32) + gvec[3:4, :]
    out_ref[...] = logits.astype(out_ref.dtype)   # (BATCH, NCP) lane-dense store


# ---------------- parameter construction (synthetic, zero-padded to 128 lanes) ----------------

def init_params(key):
    # Deterministic synthetic init (the real module loads pretrained RoBERTa weights).
    # Padded weight rows/cols, biases and LN gamma/beta are zero, so padded activation lanes
    # stay exactly zero throughout the kernel.
    keys = iter(jax.random.split(key, 64))

    def nrm(shape):
        return jax.random.normal(next(keys), shape, jnp.float32) * 0.02

    def pad2(w, rows, cols):
        return jnp.pad(w, ((0, rows - w.shape[0]), (0, cols - w.shape[1])))

    def padv(v, n=HP):
        return jnp.pad(v, (0, n - v.shape[0]))

    ones_h = padv(jnp.ones((HIDDEN,), jnp.float32))
    zeros_h = jnp.zeros((HP,), jnp.float32)

    lw, lvec = [], []
    for _ in range(LAYERS):
        wq = pad2(nrm((HIDDEN, HIDDEN)), HP, HP)
        wk = pad2(nrm((HIDDEN, HIDDEN)), HP, HP)
        wv = pad2(nrm((HIDDEN, HIDDEN)), HP, HP)
        wo = pad2(nrm((HIDDEN, HIDDEN)), HP, HP)
        w1 = pad2(nrm((HIDDEN, FFN)), HP, FP)
        w2 = pad2(nrm((FFN, HIDDEN)), FP, HP)
        lw.append(jnp.concatenate([wq, wk, wv, wo, w1, w2], axis=1))   # (HP, 6*HP)
        lvec.append(jnp.stack([
            padv(nrm((HIDDEN,))),            # 0: q bias
            padv(nrm((HIDDEN,))),            # 1: k bias
            padv(nrm((HIDDEN,))),            # 2: v bias
            padv(nrm((HIDDEN,))),            # 3: attn-out bias
            ones_h,                          # 4: LN1 gamma
            zeros_h,                         # 5: LN1 beta
            padv(nrm((FFN,)), FP),           # 6: FFN1 bias
            padv(nrm((HIDDEN,))),            # 7: FFN2 bias
            ones_h,                          # 8: LN2 gamma
            zeros_h,                         # 9: LN2 beta
        ], axis=0))                          # (N_LVEC, HP)

    gvec = jnp.stack([
        ones_h,                              # embedding LN gamma
        zeros_h,                             # embedding LN beta
        padv(nrm((HIDDEN,))),                # pooler bias
        padv(nrm((N_CLASSES,)), NCP),        # classifier bias
    ], axis=0)                               # (4, HP)

    hw = jnp.concatenate([pad2(nrm((HIDDEN, HIDDEN)), HP, HP),         # pooler weight
                          pad2(nrm((HIDDEN, N_CLASSES)), HP, NCP)],    # classifier weight
                         axis=1).astype(jnp.bfloat16)                  # (HP, 2*HP)

    return dict(
        word_emb=pad2(nrm((VOCAB, HIDDEN)), VOCAB, HP),
        pos_emb=pad2(nrm((MAX_POS, HIDDEN)), MAX_POS, HP),
        type_emb=pad2(nrm((1, HIDDEN)), 1, HP),
        gvec=gvec,
        lvec=jnp.stack(lvec, axis=0),                        # (LAYERS, N_LVEC, HP) f32
        lw=jnp.stack(lw, axis=0).astype(jnp.bfloat16),       # (LAYERS, HP, 6*HP) bf16
        hw=hw,
    )


# ---------------- model wrapper (gathers + one grid-less fused pallas_call) ----------------

def roberta_classifier(params, input_ids, attention_mask):
    B, S = input_ids.shape
    mask_f = attention_mask.astype(jnp.float32)

    # RoBERTa-style position ids from the attention mask (glue / gather, not hot path).
    pos_ids = (jnp.cumsum(attention_mask, axis=1) * attention_mask + PAD_ID).astype(jnp.int32)
    pos_ids = jnp.minimum(pos_ids, MAX_POS - 1)

    # TODO(synk): fuse the embedding row-gather into the kernel (scalar-prefetched ids +
    # DMA row gather); kept as one tiny XLA gather ahead of the fused kernel for now.
    emb = (params['word_emb'][input_ids]
           + params['pos_emb'][pos_ids]
           + params['type_emb'][0][None, None, :]).reshape(B * S, HP)

    # (TOKENS, TOKENS) additive mask: keep a key iff same example AND key is not padding.
    same_example = jnp.kron(jnp.eye(B, dtype=jnp.float32), jnp.ones((S, S), jnp.float32))
    keep = same_example * mask_f.reshape(1, B * S)
    amask = (keep - 1.0) * 1e9                              # 0 keep, -1e9 drop

    # Everything fits comfortably in VMEM at these sizes, so the whole forward is ONE
    # grid-less pallas_call with whole-array VMEM blocks.  When scaling to real RoBERTa
    # (hidden=768, ffn=3072, 12+ layers): stream per-layer weights over a layer grid axis,
    # tile w1/w2 along FFN, set vmem_limit_bytes (v7x has only 64 MiB physical VMEM), and
    # add a "parallel" token-tile axis so v7x's two TensorCores are both used.
    logits_pad = pl.pallas_call(
        roberta_kernel,
        out_shape=jax.ShapeDtypeStruct((B, NCP), jnp.float32),
        in_specs=[pl.BlockSpec(memory_space=pltpu.MemorySpace.VMEM)] * 6,
        out_specs=pl.BlockSpec(memory_space=pltpu.MemorySpace.VMEM),
    )(amask, emb, params['gvec'], params['lvec'], params['lw'], params['hw'])

    return logits_pad[:, :N_CLASSES]


if __name__ == "__main__":
    key = jax.random.PRNGKey(0)
    pkey, ikey = jax.random.split(key)
    params = init_params(pkey)

    input_ids = jax.random.randint(ikey, (BATCH, SEQ), 3, VOCAB, dtype=jnp.int32)
    attention_mask = jnp.ones((BATCH, SEQ), jnp.int32)
    # pad the tail of the second example to exercise masking
    attention_mask = attention_mask.at[1, -2:].set(0)
    input_ids = input_ids.at[1, -2:].set(PAD_ID)

    logits = jax.jit(roberta_classifier)(params, input_ids, attention_mask)
    jax.block_until_ready(logits)
    assert logits.shape == (BATCH, N_CLASSES) and logits.dtype == jnp.float32
    assert bool(jnp.all(jnp.isfinite(logits)))
    print("KERNEL_OK")
</pallas_src>

<mosaic_0001>
module attributes {stable_mosaic.version = 11 : i64} {
  func.func @roberta_kernel(%arg0: memref<16x16xf32, #tpu.memory_space<vmem>>, %arg1: memref<16x128xf32, #tpu.memory_space<vmem>>, %arg2: memref<4x128xf32, #tpu.memory_space<vmem>>, %arg3: memref<2x10x128xf32, #tpu.memory_space<vmem>>, %arg4: memref<2x128x768xbf16, #tpu.memory_space<vmem>>, %arg5: memref<128x256xbf16, #tpu.memory_space<vmem>>, %arg6: memref<2x128xf32, #tpu.memory_space<vmem>>) attributes {dimension_semantics = [], scalar_prefetch = 0 : i64, scratch_operands = 0 : i64, tpu.core_type = #tpu.core_type<tc>} {
    %c0 = arith.constant 0 : index
    %c0_0 = arith.constant 0 : index
    %0 = vector.load %arg0[%c0, %c0_0] : memref<16x16xf32, #tpu.memory_space<vmem>>, vector<16x16xf32>
    %c0_1 = arith.constant 0 : index
    %c0_2 = arith.constant 0 : index
    %1 = vector.load %arg2[%c0_1, %c0_2] : memref<4x128xf32, #tpu.memory_space<vmem>>, vector<4x128xf32>
    %c0_3 = arith.constant 0 : index
    %c0_4 = arith.constant 0 : index
    %2 = vector.load %arg1[%c0_3, %c0_4] : memref<16x128xf32, #tpu.memory_space<vmem>>, vector<16x128xf32>
    %3 = vector.extract_strided_slice %1 {offsets = [0, 0], sizes = [1, 128], strides = [1, 1]} : vector<4x128xf32> to vector<1x128xf32>
    %4 = vector.extract_strided_slice %1 {offsets = [1, 0], sizes = [1, 128], strides = [1, 1]} : vector<4x128xf32> to vector<1x128xf32>
    %cst = arith.constant dense<0.000000e+00> : vector<16xf32>
    %5 = vector.multi_reduction <add>, %2, %cst [1] : vector<16x128xf32> to vector<16xf32>
    %6 = vector.shape_cast %5 : vector<16xf32> to vector<16x1xf32>
    %cst_5 = arith.constant 3.125000e-02 : f32
    %7 = vector.broadcast %cst_5 : f32 to vector<16x1xf32>
    %8 = arith.mulf %6, %7 : vector<16x1xf32>
    %9 = arith.mulf %2, %2 : vector<16x128xf32>
    %cst_6 = arith.constant dense<0.000000e+00> : vector<16xf32>
    %10 = vector.multi_reduction <add>, %9, %cst_6 [1] : vector<16x128xf32> to vector<16xf32>
    %11 = vector.shape_cast %10 : vector<16xf32> to vector<16x1xf32>
    %cst_7 = arith.constant 3.125000e-02 : f32
    %12 = vector.broadcast %cst_7 : f32 to vector<16x1xf32>
    %13 = arith.mulf %11, %12 : vector<16x1xf32>
    %14 = arith.mulf %8, %8 : vector<16x1xf32>
    %15 = arith.subf %13, %14 : vector<16x1xf32>
    %cst_8 = arith.constant 0.000000e+00 : f32
    %16 = vector.broadcast %cst_8 : f32 to vector<16x1xf32>
    %17 = arith.maximumf %15, %16 : vector<16x1xf32>
    %18 = vector.broadcast %8 : vector<16x1xf32> to vector<16x128xf32>
    %19 = arith.subf %2, %18 : vector<16x128xf32>
    %cst_9 = arith.constant 9.99999974E-6 : f32
    %20 = vector.broadcast %cst_9 : f32 to vector<16x1xf32>
    %21 = arith.addf %17, %20 : vector<16x1xf32>
    %22 = math.rsqrt %21 : vector<16x1xf32>
    %23 = vector.broadcast %22 : vector<16x1xf32> to vector<16x128xf32>
    %24 = arith.mulf %19, %23 : vector<16x128xf32>
    %25 = vector.broadcast %3 : vector<1x128xf32> to vector<16x128xf32>
    %26 = arith.mulf %24, %25 : vector<16x128xf32>
    %27 = vector.broadcast %4 : vector<1x128xf32> to vector<16x128xf32>
    %28 = arith.addf %26, %27 : vector<16x128xf32>
    %c0_10 = arith.constant 0 : index
    %c0_11 = arith.constant 0 : index
    %c0_12 = arith.constant 0 : index
    %29 = vector.load %arg4[%c0_10, %c0_11, %c0_12] : memref<2x128x768xbf16, #tpu.memory_space<vmem>>, vector<1x128x768xbf16>
    %30 = vector.shape_cast %29 : vector<1x128x768xbf16> to vector<128x768xbf16>
    %c0_13 = arith.constant 0 : index
    %c0_14 = arith.constant 0 : index
    %c0_15 = arith.constant 0 : index
    %31 = vector.load %arg3[%c0_13, %c0_14, %c0_15] : memref<2x10x128xf32, #tpu.memory_space<vmem>>, vector<1x10x128xf32>
    %32 = vector.shape_cast %31 : vector<1x10x128xf32> to vector<10x128xf32>
    %33 = arith.truncf %28 : vector<16x128xf32> to vector<16x128xbf16>
    %34 = vector.extract_strided_slice %30 {offsets = [0, 0], sizes = [128, 384], strides = [1, 1]} : vector<128x768xbf16> to vector<128x384xbf16>
    %cst_16 = arith.constant dense<0.000000e+00> : vector<16x384xf32>
    %35 = tpu.matmul %33, %34, %cst_16 {dimension_numbers = #tpu.dot_dimension_numbers<[1], [0], [0], [1], [0, 0, 1, 1], [], []>} : vector<16x128xbf16>, vector<128x384xbf16>, vector<16x384xf32> -> vector<16x384xf32>
    %36 = vector.extract_strided_slice %35 {offsets = [0, 0], sizes = [16, 128], strides = [1, 1]} : vector<16x384xf32> to vector<16x128xf32>
    %37 = vector.extract_strided_slice %32 {offsets = [0, 0], sizes = [1, 128], strides = [1, 1]} : vector<10x128xf32> to vector<1x128xf32>
    %38 = vector.broadcast %37 : vector<1x128xf32> to vector<16x128xf32>
    %39 = arith.addf %36, %38 : vector<16x128xf32>
    %40 = vector.extract_strided_slice %35 {offsets = [0, 128], sizes = [16, 128], strides = [1, 1]} : vector<16x384xf32> to vector<16x128xf32>
    %41 = vector.extract_strided_slice %32 {offsets = [1, 0], sizes = [1, 128], strides = [1, 1]} : vector<10x128xf32> to vector<1x128xf32>
    %42 = vector.broadcast %41 : vector<1x128xf32> to vector<16x128xf32>
    %43 = arith.addf %40, %42 : vector<16x128xf32>
    %44 = vector.extract_strided_slice %35 {offsets = [0, 256], sizes = [16, 128], strides = [1, 1]} : vector<16x384xf32> to vector<16x128xf32>
    %45 = vector.extract_strided_slice %32 {offsets = [2, 0], sizes = [1, 128], strides = [1, 1]} : vector<10x128xf32> to vector<1x128xf32>
    %46 = vector.broadcast %45 : vector<1x128xf32> to vector<16x128xf32>
    %47 = arith.addf %44, %46 : vector<16x128xf32>
    %48 = vector.extract_strided_slice %39 {offsets = [0, 0], sizes = [16, 8], strides = [1, 1]} : vector<16x128xf32> to vector<16x8xf32>
    %49 = vector.extract_strided_slice %43 {offsets = [0, 0], sizes = [16, 8], strides = [1, 1]} : vector<16x128xf32> to vector<16x8xf32>
    %50 = tpu.transpose %49, [1, 0] : vector<16x8xf32> -> vector<8x16xf32>
    %cst_17 = arith.constant dense<0.000000e+00> : vector<16x16xf32>
    %51 = tpu.matmul %48, %50, %cst_17 {dimension_numbers = #tpu.dot_dimension_numbers<[1], [0], [0], [1], [0, 0, 1, 1], [], []>} : vector<16x8xf32>, vector<8x16xf32>, vector<16x16xf32> -> vector<16x16xf32>
    %cst_18 = arith.constant 0.353553385 : f32
    %52 = vector.broadcast %cst_18 : f32 to vector<16x16xf32>
    %53 = arith.mulf %51, %52 : vector<16x16xf32>
    %54 = arith.addf %53, %0 : vector<16x16xf32>
    %cst_19 = arith.constant dense<0xFF800000> : vector<16xf32>
    %55 = vector.multi_reduction <maximumf>, %54, %cst_19 [1] : vector<16x16xf32> to vector<16xf32>
    %56 = vector.shape_cast %55 : vector<16xf32> to vector<16x1xf32>
    %57 = vector.broadcast %56 : vector<16x1xf32> to vector<16x16xf32>
    %58 = arith.subf %54, %57 : vector<16x16xf32>
    %59 = math.exp %58 : vector<16x16xf32>
    %cst_20 = arith.constant dense<0.000000e+00> : vector<16xf32>
    %60 = vector.multi_reduction <add>, %59, %cst_20 [1] : vector<16x16xf32> to vector<16xf32>
    %61 = vector.shape_cast %60 : vector<16xf32> to vector<16x1xf32>
    %62 = tpu.reciprocal %61 {approx = true} : vector<16x1xf32> -> vector<16x1xf32>
    %63 = vector.broadcast %62 : vector<16x1xf32> to vector<16x16xf32>
    %64 = arith.mulf %59, %63 : vector<16x16xf32>
    %65 = vector.extract_strided_slice %47 {offsets = [0, 0], sizes = [16, 8], strides = [1, 1]} : vector<16x128xf32> to vector<16x8xf32>
    %cst_21 = arith.constant dense<0.000000e+00> : vector<16x8xf32>
    %66 = tpu.matmul %64, %65, %cst_21 {dimension_numbers = #tpu.dot_dimension_numbers<[1], [0], [0], [1], [0, 0, 1, 1], [], []>} : vector<16x16xf32>, vector<16x8xf32>, vector<16x8xf32> -> vector<16x8xf32>
    %67 = vector.extract_strided_slice %39 {offsets = [0, 8], sizes = [16, 8], strides = [1, 1]} : vector<16x128xf32> to vector<16x8xf32>
    %68 = vector.extract_strided_slice %43 {offsets = [0, 8], sizes = [16, 8], strides = [1, 1]} : vector<16x128xf32> to vector<16x8xf32>
    %69 = tpu.transpose %68, [1, 0] : vector<16x8xf32> -> vector<8x16xf32>
    %cst_22 = arith.constant dense<0.000000e+00> : vector<16x16xf32>
    %70 = tpu.matmul %67, %69, %cst_22 {dimension_numbers = #tpu.dot_dimension_numbers<[1], [0], [0], [1], [0, 0, 1, 1], [], []>} : vector<16x8xf32>, vector<8x16xf32>, vector<16x16xf32> -> vector<16x16xf32>
    %cst_23 = arith.constant 0.353553385 : f32
    %71 = vector.broadcast %cst_23 : f32 to vector<16x16xf32>
    %72 = arith.mulf %70, %71 : vector<16x16xf32>
    %73 = arith.addf %72, %0 : vector<16x16xf32>
    %cst_24 = arith.constant dense<0xFF800000> : vector<16xf32>
    %74 = vector.multi_reduction <maximumf>, %73, %cst_24 [1] : vector<16x16xf32> to vector<16xf32>
    %75 = vector.shape_cast %74 : vector<16xf32> to vector<16x1xf32>
    %76 = vector.broadcast %75 : vector<16x1xf32> to vector<16x16xf32>
    %77 = arith.subf %73, %76 : vector<16x16xf32>
    %78 = math.exp %77 : vector<16x16xf32>
    %cst_25 = arith.constant dense<0.000000e+00> : vector<16xf32>
    %79 = vector.multi_reduction <add>, %78, %cst_25 [1] : vector<16x16xf32> to vector<16xf32>
    %80 = vector.shape_cast %79 : vector<16xf32> to vector<16x1xf32>
    %81 = tpu.reciprocal %80 {approx = true} : vector<16x1xf32> -> vector<16x1xf32>
    %82 = vector.broadcast %81 : vector<16x1xf32> to vector<16x16xf32>
    %83 = arith.mulf %78, %82 : vector<16x16xf32>
    %84 = vector.extract_strided_slice %47 {offsets = [0, 8], sizes = [16, 8], strides = [1, 1]} : vector<16x128xf32> to vector<16x8xf32>
    %cst_26 = arith.constant dense<0.000000e+00> : vector<16x8xf32>
    %85 = tpu.matmul %83, %84, %cst_26 {dimension_numbers = #tpu.dot_dimension_numbers<[1], [0], [0], [1], [0, 0, 1, 1], [], []>} : vector<16x16xf32>, vector<16x8xf32>, vector<16x8xf32> -> vector<16x8xf32>
    %86 = vector.extract_strided_slice %39 {offsets = [0, 16], sizes = [16, 8], strides = [1, 1]} : vector<16x128xf32> to vector<16x8xf32>
    %87 = vector.extract_strided_slice %43 {offsets = [0, 16], sizes = [16, 8], strides = [1, 1]} : vector<16x128xf32> to vector<16x8xf32>
    %88 = tpu.transpose %87, [1, 0] : vector<16x8xf32> -> vector<8x16xf32>
    %cst_27 = arith.constant dense<0.000000e+00> : vector<16x16xf32>
    %89 = tpu.matmul %86, %88, %cst_27 {dimension_numbers = #tpu.dot_dimension_numbers<[1], [0], [0], [1], [0, 0, 1, 1], [], []>} : vector<16x8xf32>, vector<8x16xf32>, vector<16x16xf32> -> vector<16x16xf32>
    %cst_28 = arith.constant 0.353553385 : f32
    %90 = vector.broadcast %cst_28 : f32 to vector<16x16xf32>
    %91 = arith.mulf %89, %90 : vector<16x16xf32>
    %92 = arith.addf %91, %0 : vector<16x16xf32>
    %cst_29 = arith.constant dense<0xFF800000> : vector<16xf32>
    %93 = vector.multi_reduction <maximumf>, %92, %cst_29 [1] : vector<16x16xf32> to vector<16xf32>
    %94 = vector.shape_cast %93 : vector<16xf32> to vector<16x1xf32>
    %95 = vector.broadcast %94 : vector<16x1xf32> to vector<16x16xf32>
    %96 = arith.subf %92, %95 : vector<16x16xf32>
    %97 = math.exp %96 : vector<16x16xf32>
    %cst_30 = arith.constant dense<0.000000e+00> : vector<16xf32>
    %98 = vector.multi_reduction <add>, %97, %cst_30 [1] : vector<16x16xf32> to vector<16xf32>
    %99 = vector.shape_cast %98 : vector<16xf32> to vector<16x1xf32>
    %100 = tpu.reciprocal %99 {approx = true} : vector<16x1xf32> -> vector<16x1xf32>
    %101 = vector.broadcast %100 : vector<16x1xf32> to vector<16x16xf32>
    %102 = arith.mulf %97, %101 : vector<16x16xf32>
    %103 = vector.extract_strided_slice %47 {offsets = [0, 16], sizes = [16, 8], strides = [1, 1]} : vector<16x128xf32> to vector<16x8xf32>
    %cst_31 = arith.constant dense<0.000000e+00> : vector<16x8xf32>
    %104 = tpu.matmul %102, %103, %cst_31 {dimension_numbers = #tpu.dot_dimension_numbers<[1], [0], [0], [1], [0, 0, 1, 1], [], []>} : vector<16x16xf32>, vector<16x8xf32>, vector<16x8xf32> -> vector<16x8xf32>
    %105 = vector.extract_strided_slice %39 {offsets = [0, 24], sizes = [16, 8], strides = [1, 1]} : vector<16x128xf32> to vector<16x8xf32>
    %106 = vector.extract_strided_slice %43 {offsets = [0, 24], sizes = [16, 8], strides = [1, 1]} : vector<16x128xf32> to vector<16x8xf32>
    %107 = tpu.transpose %106, [1, 0] : vector<16x8xf32> -> vector<8x16xf32>
    %cst_32 = arith.constant dense<0.000000e+00> : vector<16x16xf32>
    %108 = tpu.matmul %105, %107, %cst_32 {dimension_numbers = #tpu.dot_dimension_numbers<[1], [0], [0], [1], [0, 0, 1, 1], [], []>} : vector<16x8xf32>, vector<8x16xf32>, vector<16x16xf32> -> vector<16x16xf32>
    %cst_33 = arith.constant 0.353553385 : f32
    %109 = vector.broadcast %cst_33 : f32 to vector<16x16xf32>
    %110 = arith.mulf %108, %109 : vector<16x16xf32>
    %111 = arith.addf %110, %0 : vector<16x16xf32>
    %cst_34 = arith.constant dense<0xFF800000> : vector<16xf32>
    %112 = vector.multi_reduction <maximumf>, %111, %cst_34 [1] : vector<16x16xf32> to vector<16xf32>
    %113 = vector.shape_cast %112 : vector<16xf32> to vector<16x1xf32>
    %114 = vector.broadcast %113 : vector<16x1xf32> to vector<16x16xf32>
    %115 = arith.subf %111, %114 : vector<16x16xf32>
    %116 = math.exp %115 : vector<16x16xf32>
    %cst_35 = arith.constant dense<0.000000e+00> : vector<16xf32>
    %117 = vector.multi_reduction <add>, %116, %cst_35 [1] : vector<16x16xf32> to vector<16xf32>
    %118 = vector.shape_cast %117 : vector<16xf32> to vector<16x1xf32>
    %119 = tpu.reciprocal %118 {approx = true} : vector<16x1xf32> -> vector<16x1xf32>
    %120 = vector.broadcast %119 : vector<16x1xf32> to vector<16x16xf32>
    %121 = arith.mulf %116, %120 : vector<16x16xf32>
    %122 = vector.extract_strided_slice %47 {offsets = [0, 24], sizes = [16, 8], strides = [1, 1]} : vector<16x128xf32> to vector<16x8xf32>
    %cst_36 = arith.constant dense<0.000000e+00> : vector<16x8xf32>
    %123 = tpu.matmul %121, %122, %cst_36 {dimension_numbers = #tpu.dot_dimension_numbers<[1], [0], [0], [1], [0, 0, 1, 1], [], []>} : vector<16x16xf32>, vector<16x8xf32>, vector<16x8xf32> -> vector<16x8xf32>
    %cst_37 = arith.constant 0.000000e+00 : f32
    %124 = vector.broadcast %cst_37 : f32 to vector<16x96xf32>
    %125 = tpu.concatenate %66, %85, %104, %123, %124 in 1 : vector<16x8xf32>, vector<16x8xf32>, vector<16x8xf32>, vector<16x8xf32>, vector<16x96xf32> -> vector<16x128xf32>
    %126 = arith.truncf %125 : vector<16x128xf32> to vector<16x128xbf16>
    %127 = vector.extract_strided_slice %30 {offsets = [0, 384], sizes = [128, 128], strides = [1, 1]} : vector<128x768xbf16> to vector<128x128xbf16>
    %cst_38 = arith.constant dense<0.000000e+00> : vector<16x128xf32>
    %128 = tpu.matmul %126, %127, %cst_38 {dimension_numbers = #tpu.dot_dimension_numbers<[1], [0], [0], [1], [0, 0, 1, 1], [], []>} : vector<16x128xbf16>, vector<128x128xbf16>, vector<16x128xf32> -> vector<16x128xf32>
    %129 = vector.extract_strided_slice %32 {offsets = [3, 0], sizes = [1, 128], strides = [1, 1]} : vector<10x128xf32> to vector<1x128xf32>
    %130 = vector.broadcast %129 : vector<1x128xf32> to vector<16x128xf32>
    %131 = arith.addf %128, %130 : vector<16x128xf32>
    %132 = arith.addf %131, %28 : vector<16x128xf32>
    %133 = vector.extract_strided_slice %32 {offsets = [4, 0], sizes = [1, 128], strides = [1, 1]} : vector<10x128xf32> to vector<1x128xf32>
    %134 = vector.extract_strided_slice %32 {offsets = [5, 0], sizes = [1, 128], strides = [1, 1]} : vector<10x128xf32> to vector<1x128xf32>
    %cst_39 = arith.constant dense<0.000000e+00> : vector<16xf32>
    %135 = vector.multi_reduction <add>, %132, %cst_39 [1] : vector<16x128xf32> to vector<16xf32>
    %136 = vector.shape_cast %135 : vector<16xf32> to vector<16x1xf32>
    %cst_40 = arith.constant 3.125000e-02 : f32
    %137 = vector.broadcast %cst_40 : f32 to vector<16x1xf32>
    %138 = arith.mulf %136, %137 : vector<16x1xf32>
    %139 = arith.mulf %132, %132 : vector<16x128xf32>
    %cst_41 = arith.constant dense<0.000000e+00> : vector<16xf32>
    %140 = vector.multi_reduction <add>, %139, %cst_41 [1] : vector<16x128xf32> to vector<16xf32>
    %141 = vector.shape_cast %140 : vector<16xf32> to vector<16x1xf32>
    %cst_42 = arith.constant 3.125000e-02 : f32
    %142 = vector.broadcast %cst_42 : f32 to vector<16x1xf32>
    %143 = arith.mulf %141, %142 : vector<16x1xf32>
    %144 = arith.mulf %138, %138 : vector<16x1xf32>
    %145 = arith.subf %143, %144 : vector<16x1xf32>
    %cst_43 = arith.constant 0.000000e+00 : f32
    %146 = vector.broadcast %cst_43 : f32 to vector<16x1xf32>
    %147 = arith.maximumf %145, %146 : vector<16x1xf32>
    %148 = vector.broadcast %138 : vector<16x1xf32> to vector<16x128xf32>
    %149 = arith.subf %132, %148 : vector<16x128xf32>
    %cst_44 = arith.constant 9.99999974E-6 : f32
    %150 = vector.broadcast %cst_44 : f32 to vector<16x1xf32>
    %151 = arith.addf %147, %150 : vector<16x1xf32>
    %152 = math.rsqrt %151 : vector<16x1xf32>
    %153 = vector.broadcast %152 : vector<16x1xf32> to vector<16x128xf32>
    %154 = arith.mulf %149, %153 : vector<16x128xf32>
    %155 = vector.broadcast %133 : vector<1x128xf32> to vector<16x128xf32>
    %156 = arith.mulf %154, %155 : vector<16x128xf32>
    %157 = vector.broadcast %134 : vector<1x128xf32> to vector<16x128xf32>
    %158 = arith.addf %156, %157 : vector<16x128xf32>
    %159 = arith.truncf %158 : vector<16x128xf32> to vector<16x128xbf16>
    %160 = vector.extract_strided_slice %30 {offsets = [0, 512], sizes = [128, 128], strides = [1, 1]} : vector<128x768xbf16> to vector<128x128xbf16>
    %cst_45 = arith.constant dense<0.000000e+00> : vector<16x128xf32>
    %161 = tpu.matmul %159, %160, %cst_45 {dimension_numbers = #tpu.dot_dimension_numbers<[1], [0], [0], [1], [0, 0, 1, 1], [], []>} : vector<16x128xbf16>, vector<128x128xbf16>, vector<16x128xf32> -> vector<16x128xf32>
    %162 = vector.extract_strided_slice %32 {offsets = [6, 0], sizes = [1, 128], strides = [1, 1]} : vector<10x128xf32> to vector<1x128xf32>
    %163 = vector.broadcast %162 : vector<1x128xf32> to vector<16x128xf32>
    %164 = arith.addf %161, %163 : vector<16x128xf32>
    %cst_46 = arith.constant 5.000000e-01 : f32
    %165 = vector.broadcast %cst_46 : f32 to vector<16x128xf32>
    %166 = arith.mulf %165, %164 : vector<16x128xf32>
    %cst_47 = arith.constant 4.471500e-02 : f32
    %167 = vector.broadcast %cst_47 : f32 to vector<16x128xf32>
    %168 = arith.mulf %167, %164 : vector<16x128xf32>
    %169 = arith.mulf %168, %164 : vector<16x128xf32>
    %170 = arith.mulf %169, %164 : vector<16x128xf32>
    %171 = arith.addf %164, %170 : vector<16x128xf32>
    %cst_48 = arith.constant 0.797884583 : f32
    %172 = vector.broadcast %cst_48 : f32 to vector<16x128xf32>
    %173 = arith.mulf %172, %171 : vector<16x128xf32>
    %174 = math.tanh %173 : vector<16x128xf32>
    %cst_49 = arith.constant 1.000000e+00 : f32
    %175 = vector.broadcast %cst_49 : f32 to vector<16x128xf32>
    %176 = arith.addf %175, %174 : vector<16x128xf32>
    %177 = arith.mulf %166, %176 : vector<16x128xf32>
    %178 = arith.truncf %177 : vector<16x128xf32> to vector<16x128xbf16>
    %179 = vector.extract_strided_slice %30 {offsets = [0, 640], sizes = [128, 128], strides = [1, 1]} : vector<128x768xbf16> to vector<128x128xbf16>
    %cst_50 = arith.constant dense<0.000000e+00> : vector<16x128xf32>
    %180 = tpu.matmul %178, %179, %cst_50 {dimension_numbers = #tpu.dot_dimension_numbers<[1], [0], [0], [1], [0, 0, 1, 1], [], []>} : vector<16x128xbf16>, vector<128x128xbf16>, vector<16x128xf32> -> vector<16x128xf32>
    %181 = vector.extract_strided_slice %32 {offsets = [7, 0], sizes = [1, 128], strides = [1, 1]} : vector<10x128xf32> to vector<1x128xf32>
    %182 = vector.broadcast %181 : vector<1x128xf32> to vector<16x128xf32>
    %183 = arith.addf %180, %182 : vector<16x128xf32>
    %184 = arith.addf %183, %158 : vector<16x128xf32>
    %185 = vector.extract_strided_slice %32 {offsets = [8, 0], sizes = [1, 128], strides = [1, 1]} : vector<10x128xf32> to vector<1x128xf32>
    %186 = vector.extract_strided_slice %32 {offsets = [9, 0], sizes = [1, 128], strides = [1, 1]} : vector<10x128xf32> to vector<1x128xf32>
    %cst_51 = arith.constant dense<0.000000e+00> : vector<16xf32>
    %187 = vector.multi_reduction <add>, %184, %cst_51 [1] : vector<16x128xf32> to vector<16xf32>
    %188 = vector.shape_cast %187 : vector<16xf32> to vector<16x1xf32>
    %cst_52 = arith.constant 3.125000e-02 : f32
    %189 = vector.broadcast %cst_52 : f32 to vector<16x1xf32>
    %190 = arith.mulf %188, %189 : vector<16x1xf32>
    %191 = arith.mulf %184, %184 : vector<16x128xf32>
    %cst_53 = arith.constant dense<0.000000e+00> : vector<16xf32>
    %192 = vector.multi_reduction <add>, %191, %cst_53 [1] : vector<16x128xf32> to vector<16xf32>
    %193 = vector.shape_cast %192 : vector<16xf32> to vector<16x1xf32>
    %cst_54 = arith.constant 3.125000e-02 : f32
    %194 = vector.broadcast %cst_54 : f32 to vector<16x1xf32>
    %195 = arith.mulf %193, %194 : vector<16x1xf32>
    %196 = arith.mulf %190, %190 : vector<16x1xf32>
    %197 = arith.subf %195, %196 : vector<16x1xf32>
    %cst_55 = arith.constant 0.000000e+00 : f32
    %198 = vector.broadcast %cst_55 : f32 to vector<16x1xf32>
    %199 = arith.maximumf %197, %198 : vector<16x1xf32>
    %200 = vector.broadcast %190 : vector<16x1xf32> to vector<16x128xf32>
    %201 = arith.subf %184, %200 : vector<16x128xf32>
    %cst_56 = arith.constant 9.99999974E-6 : f32
    %202 = vector.broadcast %cst_56 : f32 to vector<16x1xf32>
    %203 = arith.addf %199, %202 : vector<16x1xf32>
    %204 = math.rsqrt %203 : vector<16x1xf32>
    %205 = vector.broadcast %204 : vector<16x1xf32> to vector<16x128xf32>
    %206 = arith.mulf %201, %205 : vector<16x128xf32>
    %207 = vector.broadcast %185 : vector<1x128xf32> to vector<16x128xf32>
    %208 = arith.mulf %206, %207 : vector<16x128xf32>
    %209 = vector.broadcast %186 : vector<1x128xf32> to vector<16x128xf32>
    %210 = arith.addf %208, %209 : vector<16x128xf32>
    %c1 = arith.constant 1 : index
    %c0_57 = arith.constant 0 : index
    %c0_58 = arith.constant 0 : index
    %211 = vector.load %arg4[%c1, %c0_57, %c0_58] : memref<2x128x768xbf16, #tpu.memory_space<vmem>>, vector<1x128x768xbf16>
    %212 = vector.shape_cast %211 : vector<1x128x768xbf16> to vector<128x768xbf16>
    %c1_59 = arith.constant 1 : index
    %c0_60 = arith.constant 0 : index
    %c0_61 = arith.constant 0 : index
    %213 = vector.load %arg3[%c1_59, %c0_60, %c0_61] : memref<2x10x128xf32, #tpu.memory_space<vmem>>, vector<1x10x128xf32>
    %214 = vector.shape_cast %213 : vector<1x10x128xf32> to vector<10x128xf32>
    %215 = arith.truncf %210 : vector<16x128xf32> to vector<16x128xbf16>
    %216 = vector.extract_strided_slice %212 {offsets = [0, 0], sizes = [128, 384], strides = [1, 1]} : vector<128x768xbf16> to vector<128x384xbf16>
    %cst_62 = arith.constant dense<0.000000e+00> : vector<16x384xf32>
    %217 = tpu.matmul %215, %216, %cst_62 {dimension_numbers = #tpu.dot_dimension_numbers<[1], [0], [0], [1], [0, 0, 1, 1], [], []>} : vector<16x128xbf16>, vector<128x384xbf16>, vector<16x384xf32> -> vector<16x384xf32>
    %218 = vector.extract_strided_slice %217 {offsets = [0, 0], sizes = [16, 128], strides = [1, 1]} : vector<16x384xf32> to vector<16x128xf32>
    %219 = vector.extract_strided_slice %214 {offsets = [0, 0], sizes = [1, 128], strides = [1, 1]} : vector<10x128xf32> to vector<1x128xf32>
    %220 = vector.broadcast %219 : vector<1x128xf32> to vector<16x128xf32>
    %221 = arith.addf %218, %220 : vector<16x128xf32>
    %222 = vector.extract_strided_slice %217 {offsets = [0, 128], sizes = [16, 128], strides = [1, 1]} : vector<16x384xf32> to vector<16x128xf32>
    %223 = vector.extract_strided_slice %214 {offsets = [1, 0], sizes = [1, 128], strides = [1, 1]} : vector<10x128xf32> to vector<1x128xf32>
    %224 = vector.broadcast %223 : vector<1x128xf32> to vector<16x128xf32>
    %225 = arith.addf %222, %224 : vector<16x128xf32>
    %226 = vector.extract_strided_slice %217 {offsets = [0, 256], sizes = [16, 128], strides = [1, 1]} : vector<16x384xf32> to vector<16x128xf32>
    %227 = vector.extract_strided_slice %214 {offsets = [2, 0], sizes = [1, 128], strides = [1, 1]} : vector<10x128xf32> to vector<1x128xf32>
    %228 = vector.broadcast %227 : vector<1x128xf32> to vector<16x128xf32>
    %229 = arith.addf %226, %228 : vector<16x128xf32>
    %230 = vector.extract_strided_slice %221 {offsets = [0, 0], sizes = [16, 8], strides = [1, 1]} : vector<16x128xf32> to vector<16x8xf32>
    %231 = vector.extract_strided_slice %225 {offsets = [0, 0], sizes = [16, 8], strides = [1, 1]} : vector<16x128xf32> to vector<16x8xf32>
    %232 = tpu.transpose %231, [1, 0] : vector<16x8xf32> -> vector<8x16xf32>
    %cst_63 = arith.constant dense<0.000000e+00> : vector<16x16xf32>
    %233 = tpu.matmul %230, %232, %cst_63 {dimension_numbers = #tpu.dot_dimension_numbers<[1], [0], [0], [1], [0, 0, 1, 1], [], []>} : vector<16x8xf32>, vector<8x16xf32>, vector<16x16xf32> -> vector<16x16xf32>
    %cst_64 = arith.constant 0.353553385 : f32
    %234 = vector.broadcast %cst_64 : f32 to vector<16x16xf32>
    %235 = arith.mulf %233, %234 : vector<16x16xf32>
    %236 = arith.addf %235, %0 : vector<16x16xf32>
    %cst_65 = arith.constant dense<0xFF800000> : vector<16xf32>
    %237 = vector.multi_reduction <maximumf>, %236, %cst_65 [1] : vector<16x16xf32> to vector<16xf32>
    %238 = vector.shape_cast %237 : vector<16xf32> to vector<16x1xf32>
    %239 = vector.broadcast %238 : vector<16x1xf32> to vector<16x16xf32>
    %240 = arith.subf %236, %239 : vector<16x16xf32>
    %241 = math.exp %240 : vector<16x16xf32>
    %cst_66 = arith.constant dense<0.000000e+00> : vector<16xf32>
    %242 = vector.multi_reduction <add>, %241, %cst_66 [1] : vector<16x16xf32> to vector<16xf32>
    %243 = vector.shape_cast %242 : vector<16xf32> to vector<16x1xf32>
    %244 = tpu.reciprocal %243 {approx = true} : vector<16x1xf32> -> vector<16x1xf32>
    %245 = vector.broadcast %244 : vector<16x1xf32> to vector<16x16xf32>
    %246 = arith.mulf %241, %245 : vector<16x16xf32>
    %247 = vector.extract_strided_slice %229 {offsets = [0, 0], sizes = [16, 8], strides = [1, 1]} : vector<16x128xf32> to vector<16x8xf32>
    %cst_67 = arith.constant dense<0.000000e+00> : vector<16x8xf32>
    %248 = tpu.matmul %246, %247, %cst_67 {dimension_numbers = #tpu.dot_dimension_numbers<[1], [0], [0], [1], [0, 0, 1, 1], [], []>} : vector<16x16xf32>, vector<16x8xf32>, vector<16x8xf32> -> vector<16x8xf32>
    %249 = vector.extract_strided_slice %221 {offsets = [0, 8], sizes = [16, 8], strides = [1, 1]} : vector<16x128xf32> to vector<16x8xf32>
    %250 = vector.extract_strided_slice %225 {offsets = [0, 8], sizes = [16, 8], strides = [1, 1]} : vector<16x128xf32> to vector<16x8xf32>
    %251 = tpu.transpose %250, [1, 0] : vector<16x8xf32> -> vector<8x16xf32>
    %cst_68 = arith.constant dense<0.000000e+00> : vector<16x16xf32>
    %252 = tpu.matmul %249, %251, %cst_68 {dimension_numbers = #tpu.dot_dimension_numbers<[1], [0], [0], [1], [0, 0, 1, 1], [], []>} : vector<16x8xf32>, vector<8x16xf32>, vector<16x16xf32> -> vector<16x16xf32>
    %cst_69 = arith.constant 0.353553385 : f32
    %253 = vector.broadcast %cst_69 : f32 to vector<16x16xf32>
    %254 = arith.mulf %252, %253 : vector<16x16xf32>
    %255 = arith.addf %254, %0 : vector<16x16xf32>
    %cst_70 = arith.constant dense<0xFF800000> : vector<16xf32>
    %256 = vector.multi_reduction <maximumf>, %255, %cst_70 [1] : vector<16x16xf32> to vector<16xf32>
    %257 = vector.shape_cast %256 : vector<16xf32> to vector<16x1xf32>
    %258 = vector.broadcast %257 : vector<16x1xf32> to vector<16x16xf32>
    %259 = arith.subf %255, %258 : vector<16x16xf32>
    %260 = math.exp %259 : vector<16x16xf32>
    %cst_71 = arith.constant dense<0.000000e+00> : vector<16xf32>
    %261 = vector.multi_reduction <add>, %260, %cst_71 [1] : vector<16x16xf32> to vector<16xf32>
    %262 = vector.shape_cast %261 : vector<16xf32> to vector<16x1xf32>
    %263 = tpu.reciprocal %262 {approx = true} : vector<16x1xf32> -> vector<16x1xf32>
    %264 = vector.broadcast %263 : vector<16x1xf32> to vector<16x16xf32>
    %265 = arith.mulf %260, %264 : vector<16x16xf32>
    %266 = vector.extract_strided_slice %229 {offsets = [0, 8], sizes = [16, 8], strides = [1, 1]} : vector<16x128xf32> to vector<16x8xf32>
    %cst_72 = arith.constant dense<0.000000e+00> : vector<16x8xf32>
    %267 = tpu.matmul %265, %266, %cst_72 {dimension_numbers = #tpu.dot_dimension_numbers<[1], [0], [0], [1], [0, 0, 1, 1], [], []>} : vector<16x16xf32>, vector<16x8xf32>, vector<16x8xf32> -> vector<16x8xf32>
    %268 = vector.extract_strided_slice %221 {offsets = [0, 16], sizes = [16, 8], strides = [1, 1]} : vector<16x128xf32> to vector<16x8xf32>
    %269 = vector.extract_strided_slice %225 {offsets = [0, 16], sizes = [16, 8], strides = [1, 1]} : vector<16x128xf32> to vector<16x8xf32>
    %270 = tpu.transpose %269, [1, 0] : vector<16x8xf32> -> vector<8x16xf32>
    %cst_73 = arith.constant dense<0.000000e+00> : vector<16x16xf32>
    %271 = tpu.matmul %268, %270, %cst_73 {dimension_numbers = #tpu.dot_dimension_numbers<[1], [0], [0], [1], [0, 0, 1, 1], [], []>} : vector<16x8xf32>, vector<8x16xf32>, vector<16x16xf32> -> vector<16x16xf32>
    %cst_74 = arith.constant 0.353553385 : f32
    %272 = vector.broadcast %cst_74 : f32 to vector<16x16xf32>
    %273 = arith.mulf %271, %272 : vector<16x16xf32>
    %274 = arith.addf %273, %0 : vector<16x16xf32>
    %cst_75 = arith.constant dense<0xFF800000> : vector<16xf32>
    %275 = vector.multi_reduction <maximumf>, %274, %cst_75 [1] : vector<16x16xf32> to vector<16xf32>
    %276 = vector.shape_cast %275 : vector<16xf32> to vector<16x1xf32>
    %277 = vector.broadcast %276 : vector<16x1xf32> to vector<16x16xf32>
    %278 = arith.subf %274, %277 : vector<16x16xf32>
    %279 = math.exp %278 : vector<16x16xf32>
    %cst_76 = arith.constant dense<0.000000e+00> : vector<16xf32>
    %280 = vector.multi_reduction <add>, %279, %cst_76 [1] : vector<16x16xf32> to vector<16xf32>
    %281 = vector.shape_cast %280 : vector<16xf32> to vector<16x1xf32>
    %282 = tpu.reciprocal %281 {approx = true} : vector<16x1xf32> -> vector<16x1xf32>
    %283 = vector.broadcast %282 : vector<16x1xf32> to vector<16x16xf32>
    %284 = arith.mulf %279, %283 : vector<16x16xf32>
    %285 = vector.extract_strided_slice %229 {offsets = [0, 16], sizes = [16, 8], strides = [1, 1]} : vector<16x128xf32> to vector<16x8xf32>
    %cst_77 = arith.constant dense<0.000000e+00> : vector<16x8xf32>
    %286 = tpu.matmul %284, %285, %cst_77 {dimension_numbers = #tpu.dot_dimension_numbers<[1], [0], [0], [1], [0, 0, 1, 1], [], []>} : vector<16x16xf32>, vector<16x8xf32>, vector<16x8xf32> -> vector<16x8xf32>
    %287 = vector.extract_strided_slice %221 {offsets = [0, 24], sizes = [16, 8], strides = [1, 1]} : vector<16x128xf32> to vector<16x8xf32>
    %288 = vector.extract_strided_slice %225 {offsets = [0, 24], sizes = [16, 8], strides = [1, 1]} : vector<16x128xf32> to vector<16x8xf32>
    %289 = tpu.transpose %288, [1, 0] : vector<16x8xf32> -> vector<8x16xf32>
    %cst_78 = arith.constant dense<0.000000e+00> : vector<16x16xf32>
    %290 = tpu.matmul %287, %289, %cst_78 {dimension_numbers = #tpu.dot_dimension_numbers<[1], [0], [0], [1], [0, 0, 1, 1], [], []>} : vector<16x8xf32>, vector<8x16xf32>, vector<16x16xf32> -> vector<16x16xf32>
    %cst_79 = arith.constant 0.353553385 : f32
    %291 = vector.broadcast %cst_79 : f32 to vector<16x16xf32>
    %292 = arith.mulf %290, %291 : vector<16x16xf32>
    %293 = arith.addf %292, %0 : vector<16x16xf32>
    %cst_80 = arith.constant dense<0xFF800000> : vector<16xf32>
    %294 = vector.multi_reduction <maximumf>, %293, %cst_80 [1] : vector<16x16xf32> to vector<16xf32>
    %295 = vector.shape_cast %294 : vector<16xf32> to vector<16x1xf32>
    %296 = vector.broadcast %295 : vector<16x1xf32> to vector<16x16xf32>
    %297 = arith.subf %293, %296 : vector<16x16xf32>
    %298 = math.exp %297 : vector<16x16xf32>
    %cst_81 = arith.constant dense<0.000000e+00> : vector<16xf32>
    %299 = vector.multi_reduction <add>, %298, %cst_81 [1] : vector<16x16xf32> to vector<16xf32>
    %300 = vector.shape_cast %299 : vector<16xf32> to vector<16x1xf32>
    %301 = tpu.reciprocal %300 {approx = true} : vector<16x1xf32> -> vector<16x1xf32>
    %302 = vector.broadcast %301 : vector<16x1xf32> to vector<16x16xf32>
    %303 = arith.mulf %298, %302 : vector<16x16xf32>
    %304 = vector.extract_strided_slice %229 {offsets = [0, 24], sizes = [16, 8], strides = [1, 1]} : vector<16x128xf32> to vector<16x8xf32>
    %cst_82 = arith.constant dense<0.000000e+00> : vector<16x8xf32>
    %305 = tpu.matmul %303, %304, %cst_82 {dimension_numbers = #tpu.dot_dimension_numbers<[1], [0], [0], [1], [0, 0, 1, 1], [], []>} : vector<16x16xf32>, vector<16x8xf32>, vector<16x8xf32> -> vector<16x8xf32>
    %cst_83 = arith.constant 0.000000e+00 : f32
    %306 = vector.broadcast %cst_83 : f32 to vector<16x96xf32>
    %307 = tpu.concatenate %248, %267, %286, %305, %306 in 1 : vector<16x8xf32>, vector<16x8xf32>, vector<16x8xf32>, vector<16x8xf32>, vector<16x96xf32> -> vector<16x128xf32>
    %308 = arith.truncf %307 : vector<16x128xf32> to vector<16x128xbf16>
    %309 = vector.extract_strided_slice %212 {offsets = [0, 384], sizes = [128, 128], strides = [1, 1]} : vector<128x768xbf16> to vector<128x128xbf16>
    %cst_84 = arith.constant dense<0.000000e+00> : vector<16x128xf32>
    %310 = tpu.matmul %308, %309, %cst_84 {dimension_numbers = #tpu.dot_dimension_numbers<[1], [0], [0], [1], [0, 0, 1, 1], [], []>} : vector<16x128xbf16>, vector<128x128xbf16>, vector<16x128xf32> -> vector<16x128xf32>
    %311 = vector.extract_strided_slice %214 {offsets = [3, 0], sizes = [1, 128], strides = [1, 1]} : vector<10x128xf32> to vector<1x128xf32>
    %312 = vector.broadcast %311 : vector<1x128xf32> to vector<16x128xf32>
    %313 = arith.addf %310, %312 : vector<16x128xf32>
    %314 = arith.addf %313, %210 : vector<16x128xf32>
    %315 = vector.extract_strided_slice %214 {offsets = [4, 0], sizes = [1, 128], strides = [1, 1]} : vector<10x128xf32> to vector<1x128xf32>
    %316 = vector.extract_strided_slice %214 {offsets = [5, 0], sizes = [1, 128], strides = [1, 1]} : vector<10x128xf32> to vector<1x128xf32>
    %cst_85 = arith.constant dense<0.000000e+00> : vector<16xf32>
    %317 = vector.multi_reduction <add>, %314, %cst_85 [1] : vector<16x128xf32> to vector<16xf32>
    %318 = vector.shape_cast %317 : vector<16xf32> to vector<16x1xf32>
    %cst_86 = arith.constant 3.125000e-02 : f32
    %319 = vector.broadcast %cst_86 : f32 to vector<16x1xf32>
    %320 = arith.mulf %318, %319 : vector<16x1xf32>
    %321 = arith.mulf %314, %314 : vector<16x128xf32>
    %cst_87 = arith.constant dense<0.000000e+00> : vector<16xf32>
    %322 = vector.multi_reduction <add>, %321, %cst_87 [1] : vector<16x128xf32> to vector<16xf32>
    %323 = vector.shape_cast %322 : vector<16xf32> to vector<16x1xf32>
    %cst_88 = arith.constant 3.125000e-02 : f32
    %324 = vector.broadcast %cst_88 : f32 to vector<16x1xf32>
    %325 = arith.mulf %323, %324 : vector<16x1xf32>
    %326 = arith.mulf %320, %320 : vector<16x1xf32>
    %327 = arith.subf %325, %326 : vector<16x1xf32>
    %cst_89 = arith.constant 0.000000e+00 : f32
    %328 = vector.broadcast %cst_89 : f32 to vector<16x1xf32>
    %329 = arith.maximumf %327, %328 : vector<16x1xf32>
    %330 = vector.broadcast %320 : vector<16x1xf32> to vector<16x128xf32>
    %331 = arith.subf %314, %330 : vector<16x128xf32>
    %cst_90 = arith.constant 9.99999974E-6 : f32
    %332 = vector.broadcast %cst_90 : f32 to vector<16x1xf32>
    %333 = arith.addf %329, %332 : vector<16x1xf32>
    %334 = math.rsqrt %333 : vector<16x1xf32>
    %335 = vector.broadcast %334 : vector<16x1xf32> to vector<16x128xf32>
    %336 = arith.mulf %331, %335 : vector<16x128xf32>
    %337 = vector.broadcast %315 : vector<1x128xf32> to vector<16x128xf32>
    %338 = arith.mulf %336, %337 : vector<16x128xf32>
    %339 = vector.broadcast %316 : vector<1x128xf32> to vector<16x128xf32>
    %340 = arith.addf %338, %339 : vector<16x128xf32>
    %341 = arith.truncf %340 : vector<16x128xf32> to vector<16x128xbf16>
    %342 = vector.extract_strided_slice %212 {offsets = [0, 512], sizes = [128, 128], strides = [1, 1]} : vector<128x768xbf16> to vector<128x128xbf16>
    %cst_91 = arith.constant dense<0.000000e+00> : vector<16x128xf32>
    %343 = tpu.matmul %341, %342, %cst_91 {dimension_numbers = #tpu.dot_dimension_numbers<[1], [0], [0], [1], [0, 0, 1, 1], [], []>} : vector<16x128xbf16>, vector<128x128xbf16>, vector<16x128xf32> -> vector<16x128xf32>
    %344 = vector.extract_strided_slice %214 {offsets = [6, 0], sizes = [1, 128], strides = [1, 1]} : vector<10x128xf32> to vector<1x128xf32>
    %345 = vector.broadcast %344 : vector<1x128xf32> to vector<16x128xf32>
    %346 = arith.addf %343, %345 : vector<16x128xf32>
    %cst_92 = arith.constant 5.000000e-01 : f32
    %347 = vector.broadcast %cst_92 : f32 to vector<16x128xf32>
    %348 = arith.mulf %347, %346 : vector<16x128xf32>
    %cst_93 = arith.constant 4.471500e-02 : f32
    %349 = vector.broadcast %cst_93 : f32 to vector<16x128xf32>
    %350 = arith.mulf %349, %346 : vector<16x128xf32>
    %351 = arith.mulf %350, %346 : vector<16x128xf32>
    %352 = arith.mulf %351, %346 : vector<16x128xf32>
    %353 = arith.addf %346, %352 : vector<16x128xf32>
    %cst_94 = arith.constant 0.797884583 : f32
    %354 = vector.broadcast %cst_94 : f32 to vector<16x128xf32>
    %355 = arith.mulf %354, %353 : vector<16x128xf32>
    %356 = math.tanh %355 : vector<16x128xf32>
    %cst_95 = arith.constant 1.000000e+00 : f32
    %357 = vector.broadcast %cst_95 : f32 to vector<16x128xf32>
    %358 = arith.addf %357, %356 : vector<16x128xf32>
    %359 = arith.mulf %348, %358 : vector<16x128xf32>
    %360 = arith.truncf %359 : vector<16x128xf32> to vector<16x128xbf16>
    %361 = vector.extract_strided_slice %212 {offsets = [0, 640], sizes = [128, 128], strides = [1, 1]} : vector<128x768xbf16> to vector<128x128xbf16>
    %cst_96 = arith.constant dense<0.000000e+00> : vector<16x128xf32>
    %362 = tpu.matmul %360, %361, %cst_96 {dimension_numbers = #tpu.dot_dimension_numbers<[1], [0], [0], [1], [0, 0, 1, 1], [], []>} : vector<16x128xbf16>, vector<128x128xbf16>, vector<16x128xf32> -> vector<16x128xf32>
    %363 = vector.extract_strided_slice %214 {offsets = [7, 0], sizes = [1, 128], strides = [1, 1]} : vector<10x128xf32> to vector<1x128xf32>
    %364 = vector.broadcast %363 : vector<1x128xf32> to vector<16x128xf32>
    %365 = arith.addf %362, %364 : vector<16x128xf32>
    %366 = arith.addf %365, %340 : vector<16x128xf32>
    %367 = vector.extract_strided_slice %214 {offsets = [8, 0], sizes = [1, 128], strides = [1, 1]} : vector<10x128xf32> to vector<1x128xf32>
    %368 = vector.extract_strided_slice %214 {offsets = [9, 0], sizes = [1, 128], strides = [1, 1]} : vector<10x128xf32> to vector<1x128xf32>
    %cst_97 = arith.constant dense<0.000000e+00> : vector<16xf32>
    %369 = vector.multi_reduction <add>, %366, %cst_97 [1] : vector<16x128xf32> to vector<16xf32>
    %370 = vector.shape_cast %369 : vector<16xf32> to vector<16x1xf32>
    %cst_98 = arith.constant 3.125000e-02 : f32
    %371 = vector.broadcast %cst_98 : f32 to vector<16x1xf32>
    %372 = arith.mulf %370, %371 : vector<16x1xf32>
    %373 = arith.mulf %366, %366 : vector<16x128xf32>
    %cst_99 = arith.constant dense<0.000000e+00> : vector<16xf32>
    %374 = vector.multi_reduction <add>, %373, %cst_99 [1] : vector<16x128xf32> to vector<16xf32>
    %375 = vector.shape_cast %374 : vector<16xf32> to vector<16x1xf32>
    %cst_100 = arith.constant 3.125000e-02 : f32
    %376 = vector.broadcast %cst_100 : f32 to vector<16x1xf32>
    %377 = arith.mulf %375, %376 : vector<16x1xf32>
    %378 = arith.mulf %372, %372 : vector<16x1xf32>
    %379 = arith.subf %377, %378 : vector<16x1xf32>
    %cst_101 = arith.constant 0.000000e+00 : f32
    %380 = vector.broadcast %cst_101 : f32 to vector<16x1xf32>
    %381 = arith.maximumf %379, %380 : vector<16x1xf32>
    %382 = vector.broadcast %372 : vector<16x1xf32> to vector<16x128xf32>
    %383 = arith.subf %366, %382 : vector<16x128xf32>
    %cst_102 = arith.constant 9.99999974E-6 : f32
    %384 = vector.broadcast %cst_102 : f32 to vector<16x1xf32>
    %385 = arith.addf %381, %384 : vector<16x1xf32>
    %386 = math.rsqrt %385 : vector<16x1xf32>
    %387 = vector.broadcast %386 : vector<16x1xf32> to vector<16x128xf32>
    %388 = arith.mulf %383, %387 : vector<16x128xf32>
    %389 = vector.broadcast %367 : vector<1x128xf32> to vector<16x128xf32>
    %390 = arith.mulf %388, %389 : vector<16x128xf32>
    %391 = vector.broadcast %368 : vector<1x128xf32> to vector<16x128xf32>
    %392 = arith.addf %390, %391 : vector<16x128xf32>
    %393 = vector.shape_cast %392 : vector<16x128xf32> to vector<2x8x128xf32>
    %394 = vector.extract_strided_slice %393 {offsets = [0, 0, 0], sizes = [2, 1, 128], strides = [1, 1, 1]} : vector<2x8x128xf32> to vector<2x1x128xf32>
    %395 = vector.shape_cast %394 : vector<2x1x128xf32> to vector<2x128xf32>
    %c0_103 = arith.constant 0 : index
    %c0_104 = arith.constant 0 : index
    %396 = vector.load %arg5[%c0_103, %c0_104] : memref<128x256xbf16, #tpu.memory_space<vmem>>, vector<128x256xbf16>
    %397 = arith.truncf %395 : vector<2x128xf32> to vector<2x128xbf16>
    %398 = vector.extract_strided_slice %396 {offsets = [0, 0], sizes = [128, 128], strides = [1, 1]} : vector<128x256xbf16> to vector<128x128xbf16>
    %cst_105 = arith.constant dense<0.000000e+00> : vector<2x128xf32>
    %399 = tpu.matmul %397, %398, %cst_105 {dimension_numbers = #tpu.dot_dimension_numbers<[1], [0], [0], [1], [0, 0, 1, 1], [], []>} : vector<2x128xbf16>, vector<128x128xbf16>, vector<2x128xf32> -> vector<2x128xf32>
    %400 = vector.extract_strided_slice %1 {offsets = [2, 0], sizes = [1, 128], strides = [1, 1]} : vector<4x128xf32> to vector<1x128xf32>
    %401 = vector.broadcast %400 : vector<1x128xf32> to vector<2x128xf32>
    %402 = arith.addf %399, %401 : vector<2x128xf32>
    %403 = math.tanh %402 : vector<2x128xf32>
    %404 = arith.truncf %403 : vector<2x128xf32> to vector<2x128xbf16>
    %405 = vector.extract_strided_slice %396 {offsets = [0, 128], sizes = [128, 128], strides = [1, 1]} : vector<128x256xbf16> to vector<128x128xbf16>
    %cst_106 = arith.constant dense<0.000000e+00> : vector<2x128xf32>
    %406 = tpu.matmul %404, %405, %cst_106 {dimension_numbers = #tpu.dot_dimension_numbers<[1], [0], [0], [1], [0, 0, 1, 1], [], []>} : vector<2x128xbf16>, vector<128x128xbf16>, vector<2x128xf32> -> vector<2x128xf32>
    %407 = vector.extract_strided_slice %1 {offsets = [3, 0], sizes = [1, 128], strides = [1, 1]} : vector<4x128xf32> to vector<1x128xf32>
    %408 = vector.broadcast %407 : vector<1x128xf32> to vector<2x128xf32>
    %409 = arith.addf %406, %408 : vector<2x128xf32>
    %c0_107 = arith.constant 0 : index
    %c0_108 = arith.constant 0 : index
    %410 = vector.load %arg6[%c0_107, %c0_108] : memref<2x128xf32, #tpu.memory_space<vmem>>, vector<2x128xf32>
    tpu.vector_store %arg6[%c0_107, %c0_108], %409 {strides = array<i32>} : memref<2x128xf32, #tpu.memory_space<vmem>>, vector<2x128xf32>,
    return
  }
}

</mosaic_0001>

<llo_original>
// kernel: mul.24
$region0: #{mul.24}
  %s0 = inlined_call_operand.vmem [shape: f32[2,8], index: 0, kind: input, shape index: {}]
  %s1 = inlined_call_operand.vmem [shape: f32[16], index: 1, kind: output, shape index: {}]
  $region1: #{mul.24} parent=0
    #allocation0 [shape = 'u8[4096]{0}', space=vmem, size = 0x1000, scoped, tag = 'scoped mem for output reshape']
    #allocation1 [shape = 'u8[4096]{0}', space=vmem, size = 0x1000, scoped, tag = 'scoped mem for input reshape']
    %s3 = ssub.s32 4, 1
    %v4 = vld [vmem:[%s0] sm:%s3]
    %5 = vst [vmem:[#allocation1] sm:%s3] %v4
    %v6 = vld [vmem:[#allocation1] sm:$0x1]
    %vm7 = vcmask 64512
    %8 = vst.msk [vmem:[#allocation0] sm:$0x1] %vm7, %v6
    %s9 = scalar_lea.vmem [#allocation1], 1
    %v10 = vld [vmem:[%s9] sm:$0x1]
    %11 = vrot.lane.b32.xlu0 %v10, 8
    %v12 = vpop.permute.xlu0 %11
    %vm13 = vcmask 130112
    %14 = vst.msk [vmem:[#allocation0] sm:$0x1] %vm13, %v12
    %s16 = ssub.s32 2, 1
    %v17 = vld [vmem:[#allocation0] sm:%s16]
    %s19 = ssub.s32 2, 1
    %20 = vst [vmem:[%s1] sm:%s19] %v17

// kernel: roberta_classifier.1
$region0: #{roberta_classifier.1}
  #allocation0 [shape = 'u32[]', space=smem, size = 0x4, offset = 0x4, fixed_abs, tag = 'smem constant byte address 0x4 - core index']
  #allocation1 [shape = 'u32[72,128]{1,0:T(1,128)}', space=vmem, size = 0x9000, scoped, tag = 'internal scratch']
  %s0 = inlined_call_operand.vmem [shape: f32[16,16], index: 0, kind: input, shape index: {}]
  %s1 = inlined_call_operand.vmem [shape: f32[16,128], index: 1, kind: input, shape index: {}]
  %s2 = inlined_call_operand.vmem [shape: f32[4,128], index: 2, kind: input, shape index: {}]
  %s3 = inlined_call_operand.vmem [shape: f32[2,10,128], index: 3, kind: input, shape index: {}]
  %s4 = inlined_call_operand.hbm [shape: bf16[2,128,768], index: 4, kind: input, shape index: {}]
  %s5 = inlined_call_operand.vmem [shape: bf16[128,256], index: 5, kind: input, shape index: {}]
  %s6 = inlined_call_operand.hbm [shape: f32[2,128], index: 6, kind: output, shape index: {}]
  %s7 = sld [smem:[#allocation0]]
  $region38: #{roberta_classifier.1} parent=0
    _
  %s9 = ssub.s32 1, %s7
  %s10 = scalar_select 0, %s9, %s7
  $region1: #{roberta_classifier.1} parent=0
    #allocation2 [shape = 'u8[393216]{0}', space=vmem, size = 0x60000, scoped, tag = 'input window, operand 4, single buffered']
    #allocation3 [shape = 's32[1]{0}', space=sflag, size = 0x4, scoped, tag = 'scoped memory for roberta_classifier.1']
    #allocation4 [shape = 's32[1]{0}', space=sflag, size = 0x4, scoped, tag = 'scoped memory for roberta_classifier.1']
    #allocation5 [shape = 'u8[1024]{0}', space=vmem, size = 0x400, scoped, tag = 'output window, operand 0, single buffered']
    %11 = vsyncpa [#allocation3], 0
    %12 = vsyncpa [#allocation4], 0
    // Predicated region
    $region2: #{roberta_classifier.1} parent=1 // pred_check
      _
    $region3: #{roberta_classifier.1} parent=1 // pred_check_branch
      %14 = sbr.rel (0) target = $region5
    $region4: #{roberta_classifier.1} parent=1 // pred_region
      _
    $region5: #{roberta_classifier.1} parent=1 // pred_fallthru
      _
    // Predicated region
    $region6: #{roberta_classifier.1} parent=1 // pred_check
      _
    $region7: #{roberta_classifier.1} parent=1 // pred_check_branch
      %16 = sbr.rel (0) target = $region9
    $region8: #{roberta_classifier.1} parent=1 // pred_region
      _
    $region9: #{roberta_classifier.1} parent=1 // pred_fallthru
      _
    // Predicated region
    $region10: #{roberta_classifier.1} parent=1 // pred_check
      _
    $region11: #{roberta_classifier.1} parent=1 // pred_check_branch
      %18 = sbr.rel (0) target = $region13
    $region12: #{roberta_classifier.1} parent=1 // pred_region
      _
    $region13: #{roberta_classifier.1} parent=1 // pred_fallthru
      _
    // Predicated region
    $region14: #{roberta_classifier.1} parent=1 // pred_check
      _
    $region15: #{roberta_classifier.1} parent=1 // pred_check_branch
      %20 = sbr.rel (0) target = $region17
    $region16: #{roberta_classifier.1} parent=1 // pred_region
      _
    $region17: #{roberta_classifier.1} parent=1 // pred_fallthru
      _
    // Predicated region
    $region18: #{roberta_classifier.1} parent=1 // pred_check
      _
    $region19: #{roberta_classifier.1} parent=1 // pred_check_branch
      %22 = sbr.rel (0) target = $region21
    $region20: #{roberta_classifier.1} parent=1 // pred_region
      %24 = vsyncadd [#allocation3], 0
      %s25 = sshll.u32 %s4, 4
      %s26 = int_to_ptr.hbm [resolvable:$true] %s25
      %s27 = sshll.u32 [#allocation2], 4
      %s28 = int_to_ptr.vmem [resolvable:$true] %s27
      %33 = dma.hbm_to_vmem [thread:$0]  %s26, 12288, %s28, [#allocation3], 384, 384, 24
    $region21: #{roberta_classifier.1} parent=1 // pred_fallthru
      _
    // Predicated region
    $region22: #{roberta_classifier.1} parent=1 // pred_check
      _
    $region23: #{roberta_classifier.1} parent=1 // pred_check_branch
      %35 = sbr.rel (0) target = $region25
    $region24: #{roberta_classifier.1} parent=1 // pred_region
      _
    $region25: #{roberta_classifier.1} parent=1 // pred_fallthru
      _
    // Predicated region
    $region26: #{roberta_classifier.1} parent=1 // pred_check
      _
    $region27: #{roberta_classifier.1} parent=1 // pred_check_branch
      %37 = sbr.rel (0) target = $region29
    $region28: #{roberta_classifier.1} parent=1 // pred_region
      %39 = dma.done [#allocation3], 12288
    $region29: #{roberta_classifier.1} parent=1 // pred_fallthru
      _
    %v40 = vld [vmem:[%s0] sm:$0xff]
    %v41 = vld [vmem:[%s0 + $0x8] sm:$0xff]
    %v42 = vld [vmem:[%s2] sm:$0xf]
    %v43 = vld [vmem:[%s1] sm:$0xff]
    %v44 = vld [vmem:[%s1 + $0x8] sm:$0xff]
    %45 = vadd.xlane.f32.xlu0 %v43
    %v46 = vpop.xlane.xlu0 %45
    %47 = vadd.xlane.f32.xlu0 %v44
    %v48 = vpop.xlane.xlu0 %47
    %v49 = vmul.f32 %v46, 0.03125
    %v50 = vmul.f32 %v48, 0.03125
    %v51 = vmul.f32 %v43, %v43
    %v52 = vmul.f32 %v44, %v44
    %53 = vadd.xlane.f32.xlu0 %v51
    %v54 = vpop.xlane.xlu0 %53
    %55 = vadd.xlane.f32.xlu0 %v52
    %v56 = vpop.xlane.xlu0 %55
    %v57 = vmul.f32 %v54, 0.03125
    %v58 = vmul.f32 %v56, 0.03125
    %v59 = vmul.f32 %v49, %v49
    %v60 = vmul.f32 %v50, %v50
    %v61 = vsub.f32 %v57, %v59
    %v62 = vsub.f32 %v58, %v60
    %v63 = vmax.f32 %v61, 0.0
    %v64 = vmax.f32 %v62, 0.0
    %v65 = vsub.f32 %v43, %v49
    %v66 = vsub.f32 %v44, %v50
    %v67 = vadd.f32 %v63, 1e-05
    %v68 = vadd.f32 %v64, 1e-05
    %v69 = vrsqrt.pop %v67
    %v70 = vmul.f32 %v69, %v67
    %v71 = vmul.f32 %v70, %v69
    %v72 = vmul.f32 0.5, %v71
    %v73 = vsub.f32 1.5, %v72
    %v74 = vmul.f32 %v69, %v73
    %vm75 = vweird.f32 %v67
    %vm76 = vweird.f32 %v69
    %vm77 = vmor %vm75, %vm76
    %v78 = vsel %vm77, %v69, %v74
    %v79 = vrsqrt.pop %v68
    %v80 = vmul.f32 %v79, %v68
    %v81 = vmul.f32 %v80, %v79
    %v82 = vmul.f32 0.5, %v81
    %v83 = vsub.f32 1.5, %v82
    %v84 = vmul.f32 %v79, %v83
    %vm85 = vweird.f32 %v68
    %vm86 = vweird.f32 %v79
    %vm87 = vmor %vm85, %vm86
    %v88 = vsel %vm87, %v79, %v84
    %v89 = vmul.f32 %v65, %v78
    %v90 = vmul.f32 %v66, %v88
    %v91 = vperm.slane %v42, 0
    %v92 = vmul.f32 %v89, %v91
    %v93 = vmul.f32 %v90, %v91
    %v94 = vperm.slane %v42, 1
    %v95 = vadd.f32 %v92, %v94
    %v96 = vadd.f32 %v93, %v94
    %v97 = vld [vmem:[#allocation2] sm:$0xff]
    %v98 = vld [vmem:[#allocation2 + $0x8] sm:$0xff]
    %v99 = vld [vmem:[#allocation2 + $0x10] sm:$0xff]
    %v100 = vld [vmem:[#allocation2 + $0x18] sm:$0xff]
    %v101 = vld [vmem:[#allocation2 + $0x20] sm:$0xff]
    %v102 = vld [vmem:[#allocation2 + $0x28] sm:$0xff]
    %v103 = vld [vmem:[#allocation2 + $0x30] sm:$0xff]
    %v104 = vld [vmem:[#allocation2 + $0x38] sm:$0xff]
    %v105 = vld [vmem:[#allocation2 + $0x40] sm:$0xff]
    %v106 = vld [vmem:[#allocation2 + $0x48] sm:$0xff]
    %v107 = vld [vmem:[#allocation2 + $0x50] sm:$0xff]
    %v108 = vld [vmem:[#allocation2 + $0x58] sm:$0xff]
    %v109 = vld [vmem:[#allocation2 + $0x60] sm:$0xff]
    %v110 = vld [vmem:[#allocation2 + $0x68] sm:$0xff]
    %v111 = vld [vmem:[#allocation2 + $0x70] sm:$0xff]
    %v112 = vld [vmem:[#allocation2 + $0x78] sm:$0xff]
    %v113 = vld [vmem:[#allocation2 + $0x80] sm:$0xff]
    %v114 = vld [vmem:[#allocation2 + $0x88] sm:$0xff]
    %v115 = vld [vmem:[#allocation2 + $0x90] sm:$0xff]
    %v116 = vld [vmem:[#allocation2 + $0x98] sm:$0xff]
    %v117 = vld [vmem:[#allocation2 + $0xa0] sm:$0xff]
    %v118 = vld [vmem:[#allocation2 + $0xa8] sm:$0xff]
    %v119 = vld [vmem:[#allocation2 + $0xb0] sm:$0xff]
    %v120 = vld [vmem:[#allocation2 + $0xb8] sm:$0xff]
    %v121 = vld [vmem:[#allocation2 + $0xc0] sm:$0xff]
    %v122 = vld [vmem:[#allocation2 + $0xc8] sm:$0xff]
    %v123 = vld [vmem:[#allocation2 + $0xd0] sm:$0xff]
    %v124 = vld [vmem:[#allocation2 + $0xd8] sm:$0xff]
    %v125 = vld [vmem:[#allocation2 + $0xe0] sm:$0xff]
    %v126 = vld [vmem:[#allocation2 + $0xe8] sm:$0xff]
    %v127 = vld [vmem:[#allocation2 + $0xf0] sm:$0xff]
    %v128 = vld [vmem:[#allocation2 + $0xf8] sm:$0xff]
    %v129 = vld [vmem:[#allocation2 + $0x100] sm:$0xff]
    %v130 = vld [vmem:[#allocation2 + $0x108] sm:$0xff]
    %v131 = vld [vmem:[#allocation2 + $0x110] sm:$0xff]
    %v132 = vld [vmem:[#allocation2 + $0x118] sm:$0xff]
    %v133 = vld [vmem:[#allocation2 + $0x120] sm:$0xff]
    %v134 = vld [vmem:[#allocation2 + $0x128] sm:$0xff]
    %v135 = vld [vmem:[#allocation2 + $0x130] sm:$0xff]
    %v136 = vld [vmem:[#allocation2 + $0x138] sm:$0xff]
    %v137 = vld [vmem:[#allocation2 + $0x140] sm:$0xff]
    %v138 = vld [vmem:[#allocation2 + $0x148] sm:$0xff]
    %v139 = vld [vmem:[#allocation2 + $0x150] sm:$0xff]
    %v140 = vld [vmem:[#allocation2 + $0x158] sm:$0xff]
    %v141 = vld [vmem:[#allocation2 + $0x160] sm:$0xff]
    %v142 = vld [vmem:[#allocation2 + $0x168] sm:$0xff]
    %v143 = vld [vmem:[#allocation2 + $0x170] sm:$0xff]
    %v144 = vld [vmem:[#allocation2 + $0x178] sm:$0xff]
    %v145 = vld [vmem:[%s3] sm:$0xff]
    %v146 = vld [vmem:[%s3 + $0x8] sm:$0x3]
    %v147 = vpack.c.bf16 %v96, %v95
    %v180 = vunpack.c.l.b16 %v97
    %v181 = vunpack.c.h.b16 %v97
    %v182 = vunpack.c.l.b16 %v98
    %v183 = vunpack.c.l.b16 %v100
    %v184 = vunpack.c.h.b16 %v100
    %v185 = vunpack.c.l.b16 %v101
    %v186 = vunpack.c.l.b16 %v103
    %v187 = vunpack.c.h.b16 %v103
    %v188 = vunpack.c.l.b16 %v104
    %v189 = vunpack.c.l.b16 %v106
    %v190 = vunpack.c.h.b16 %v106
    %v191 = vunpack.c.l.b16 %v107
    %v192 = vunpack.c.l.b16 %v109
    %v193 = vunpack.c.h.b16 %v109
    %v194 = vunpack.c.l.b16 %v110
    %v195 = vunpack.c.l.b16 %v112
    %v196 = vunpack.c.h.b16 %v112
    %v197 = vunpack.c.l.b16 %v113
    %v198 = vunpack.c.l.b16 %v115
    %v199 = vunpack.c.h.b16 %v115
    %v200 = vunpack.c.l.b16 %v116
    %v201 = vunpack.c.l.b16 %v118
    %v202 = vunpack.c.h.b16 %v118
    %v203 = vunpack.c.l.b16 %v119
    %v204 = vunpack.c.l.b16 %v121
    %v205 = vunpack.c.h.b16 %v121
    %v206 = vunpack.c.l.b16 %v122
    %v207 = vunpack.c.l.b16 %v124
    %v208 = vunpack.c.h.b16 %v124
    %v209 = vunpack.c.l.b16 %v125
    %v210 = vunpack.c.l.b16 %v127
    %v211 = vunpack.c.h.b16 %v127
    %v212 = vunpack.c.l.b16 %v128
    %v213 = vunpack.c.l.b16 %v130
    %v214 = vunpack.c.h.b16 %v130
    %v215 = vunpack.c.l.b16 %v131
    %v216 = vunpack.c.l.b16 %v133
    %v217 = vunpack.c.h.b16 %v133
    %v218 = vunpack.c.l.b16 %v134
    %v219 = vunpack.c.l.b16 %v136
    %v220 = vunpack.c.h.b16 %v136
    %v221 = vunpack.c.l.b16 %v137
    %v222 = vunpack.c.l.b16 %v139
    %v223 = vunpack.c.h.b16 %v139
    %v224 = vunpack.c.l.b16 %v140
    %v225 = vunpack.c.l.b16 %v142
    %v226 = vunpack.c.h.b16 %v142
    %v227 = vunpack.c.l.b16 %v143
    %v228 = vpack.c.b16 %v183, %v180
    %v229 = vpack.c.b16 %v184, %v181
    %v230 = vpack.c.b16 %v185, %v182
    %v231 = vpack.c.b16 %v189, %v186
    %v232 = vpack.c.b16 %v190, %v187
    %v233 = vpack.c.b16 %v191, %v188
    %v234 = vpack.c.b16 %v195, %v192
    %v235 = vpack.c.b16 %v196, %v193
    %v236 = vpack.c.b16 %v197, %v194
    %v237 = vpack.c.b16 %v201, %v198
    %v238 = vpack.c.b16 %v202, %v199
    %v239 = vpack.c.b16 %v203, %v200
    %v240 = vpack.c.b16 %v207, %v204
    %v241 = vpack.c.b16 %v208, %v205
    %v242 = vpack.c.b16 %v209, %v206
    %v243 = vpack.c.b16 %v213, %v210
    %v244 = vpack.c.b16 %v214, %v211
    %v245 = vpack.c.b16 %v215, %v212
    %v246 = vpack.c.b16 %v219, %v216
    %v247 = vpack.c.b16 %v220, %v217
    %v248 = vpack.c.b16 %v221, %v218
    %v249 = vpack.c.b16 %v225, %v222
    %v250 = vpack.c.b16 %v226, %v223
    %v251 = vpack.c.b16 %v227, %v224
    %276 = vmatpush.bf16.msra.mxu0 %v249
    %277 = vmatpush.bf16.msra.mxu0 %v246
    %278 = vmatpush.bf16.msra.mxu0 %v243
    %279 = vmatpush.bf16.msra.mxu0 %v240
    %280 = vmatpush.bf16.msra.mxu0 %v237
    %281 = vmatpush.bf16.msra.mxu0 %v234
    %282 = vmatpush.bf16.msra.mxu0 %v231
    %283 = vmatpush.bf16.msra.mxu0 %v228
    %284 = vmatmul.bf16.gmra.mxu0 %v147
    %v285 = vpop.f32.mrf.mxu0
    %v286 = vadd.f32 0.0, %v285
    %v287 = vpop.f32.mrf.mxu0
    %v288 = vadd.f32 0.0, %v287
    %289 = vdwg.mxu0
    %290 = vmatpush.bf16.msra.mxu0 %v250
    %291 = vmatpush.bf16.msra.mxu0 %v247
    %292 = vmatpush.bf16.msra.mxu0 %v244
    %293 = vmatpush.bf16.msra.mxu0 %v241
    %294 = vmatpush.bf16.msra.mxu0 %v238
    %295 = vmatpush.bf16.msra.mxu0 %v235
    %296 = vmatpush.bf16.msra.mxu0 %v232
    %297 = vmatpush.bf16.msra.mxu0 %v229
    %298 = vmatmul.bf16.gmra.mxu0 %v147
    %v299 = vpop.f32.mrf.mxu0
    %v300 = vadd.f32 0.0, %v299
    %v301 = vpop.f32.mrf.mxu0
    %v302 = vadd.f32 0.0, %v301
    %303 = vdwg.mxu0
    %304 = vmatpush.bf16.msra.mxu0 %v251
    %305 = vmatpush.bf16.msra.mxu0 %v248
    %306 = vmatpush.bf16.msra.mxu0 %v245
    %307 = vmatpush.bf16.msra.mxu0 %v242
    %308 = vmatpush.bf16.msra.mxu0 %v239
    %309 = vmatpush.bf16.msra.mxu0 %v236
    %310 = vmatpush.bf16.msra.mxu0 %v233
    %311 = vmatpush.bf16.msra.mxu0 %v230
    %312 = vmatmul.bf16.gmra.mxu0 %v147
    %v313 = vpop.f32.mrf.mxu0
    %v314 = vadd.f32 0.0, %v313
    %v315 = vpop.f32.mrf.mxu0
    %v316 = vadd.f32 0.0, %v315
    %317 = vdwg.mxu0
    %v318 = vperm.slane %v145, 0
    %v319 = vadd.f32 %v286, %v318
    %v320 = vadd.f32 %v288, %v318
    %v321 = vperm.slane %v145, 1
    %v322 = vadd.f32 %v300, %v321
    %v323 = vadd.f32 %v302, %v321
    %v324 = vperm.slane %v145, 2
    %v325 = vadd.f32 %v314, %v324
    %v326 = vadd.f32 %v316, %v324
    %vm327 = vcmask 64512
    %v329 = vsel %vm327, %v319, 0
    %v332 = vsel %vm327, %v320, 0
    %v335 = vsel %vm327, %v322, 0
    %v338 = vsel %vm327, %v323, 0
    %340 = vmatpush.xpose.msra.mxu0 0.0
    %341 = vmatpush.xpose.msra.mxu0 0.0
    %342 = vmatpush.xpose.msra.mxu0 0.0
    %343 = vmatpush.xpose.msra.mxu0 0.0
    %344 = vmatpush.xpose.msra.mxu0 0.0
    %345 = vmatpush.xpose.msra.mxu0 0.0
    %346 = vmatpush.xpose.msra.mxu0 0.0
    %347 = vmatpush.xpose.msra.mxu0 0.0
    %348 = vmatpush.xpose.msra.mxu0 0.0
    %349 = vmatpush.xpose.msra.mxu0 0.0
    %350 = vmatpush.xpose.msra.mxu0 0.0
    %351 = vmatpush.xpose.msra.mxu0 0.0
    %352 = vmatpush.xpose.msra.mxu0 0.0
    %353 = vmatpush.xpose.msra.mxu0 0.0
    %354 = vmatpush.xpose.msra.mxu0 %v338
    %355 = vmatpush.xpose.msra.mxu0 %v335
    %356 = vmatmul.f32.gmra.mxu0 %v329
    %v357 = vpop.f32.mrf.mxu0
    %v358 = vadd.f32 0.0, %v357
    %359 = vmatmul.f32.gmra.mxu0 %v332
    %v360 = vpop.f32.mrf.mxu0
    %v361 = vadd.f32 0.0, %v360
    %362 = vdwg.mxu0
    %v363 = vmul.f32 %v358, 0.35355338
    %v364 = vmul.f32 %v361, 0.35355338
    %v365 = vadd.f32 %v363, %v40
    %v366 = vadd.f32 %v364, %v41
    %vm367 = vcmask 130048
    %v368 = vsel %vm367, %v365, -inf
    %369 = vmax.xlane.f32.xlu0 %v368
    %v370 = vpop.xlane.xlu0 %369
    %v371 = vsel %vm367, %v366, -inf
    %372 = vmax.xlane.f32.xlu0 %v371
    %v373 = vpop.xlane.xlu0 %372
    %v374 = vsub.f32 %v365, %v370
    %v375 = vsub.f32 %v366, %v373
    %v376 = vmul.f32 %v374, 1.442695
    %v377 = vpow.pop %v376
    %v378 = vmul.f32 %v375, 1.442695
    %v379 = vpow.pop %v378
    %v380 = vsel %vm367, %v377, 0.0
    %381 = vadd.xlane.f32.xlu0 %v380
    %v382 = vpop.xlane.xlu0 %381
    %v383 = vsel %vm367, %v379, 0.0
    %384 = vadd.xlane.f32.xlu0 %v383
    %v385 = vpop.xlane.xlu0 %384
    %v386 = vrcp.pop %v382
    %v387 = vrcp.pop %v385
    %v388 = vmul.f32 %v377, %v386
    %v389 = vmul.f32 %v379, %v387
    %v391 = vsel %vm367, %v388, 0
    %v394 = vsel %vm367, %v389, 0
    %396 = vmatpush.msra.mxu0 0.0
    %397 = vmatpush.msra.mxu0 0.0
    %398 = vmatpush.msra.mxu0 0.0
    %399 = vmatpush.msra.mxu0 0.0
    %400 = vmatpush.msra.mxu0 0.0
    %401 = vmatpush.msra.mxu0 0.0
    %402 = vmatpush.msra.mxu0 0.0
    %403 = vmatpush.msra.mxu0 0.0
    %404 = vmatpush.msra.mxu0 0.0
    %405 = vmatpush.msra.mxu0 0.0
    %406 = vmatpush.msra.mxu0 0.0
    %407 = vmatpush.msra.mxu0 0.0
    %408 = vmatpush.msra.mxu0 0.0
    %409 = vmatpush.msra.mxu0 0.0
    %410 = vmatpush.msra.mxu0 %v326
    %411 = vmatpush.msra.mxu0 %v325
    %412 = vmatmul.f32.gmra.mxu0 %v391
    %v413 = vpop.f32.mrf.mxu0
    %v414 = vadd.f32 0.0, %v413
    %415 = vmatmul.f32.gmra.mxu0 %v394
    %v416 = vpop.f32.mrf.mxu0
    %v417 = vadd.f32 0.0, %v416
    %418 = vdwg.mxu0
    %419 = vrot.lane.b32.xlu0 %v319, 120
    %v420 = vpop.permute.xlu0 %419
    %421 = vrot.lane.b32.xlu0 %v320, 120
    %v422 = vpop.permute.xlu0 %421
    %423 = vrot.lane.b32.xlu0 %v322, 120
    %v424 = vpop.permute.xlu0 %423
    %425 = vrot.lane.b32.xlu0 %v323, 120
    %v426 = vpop.permute.xlu0 %425
    %v427 = vsel %vm327, %v420, 0
    %v429 = vsel %vm327, %v422, 0
    %v431 = vsel %vm327, %v424, 0
    %v433 = vsel %vm327, %v426, 0
    %435 = vmatpush.xpose.msra.mxu0 0.0
    %436 = vmatpush.xpose.msra.mxu0 0.0
    %437 = vmatpush.xpose.msra.mxu0 0.0
    %438 = vmatpush.xpose.msra.mxu0 0.0
    %439 = vmatpush.xpose.msra.mxu0 0.0
    %440 = vmatpush.xpose.msra.mxu0 0.0
    %441 = vmatpush.xpose.msra.mxu0 0.0
    %442 = vmatpush.xpose.msra.mxu0 0.0
    %443 = vmatpush.xpose.msra.mxu0 0.0
    %444 = vmatpush.xpose.msra.mxu0 0.0
    %445 = vmatpush.xpose.msra.mxu0 0.0
    %446 = vmatpush.xpose.msra.mxu0 0.0
    %447 = vmatpush.xpose.msra.mxu0 0.0
    %448 = vmatpush.xpose.msra.mxu0 0.0
    %449 = vmatpush.xpose.msra.mxu0 %v433
    %450 = vmatpush.xpose.msra.mxu0 %v431
    %451 = vmatmul.f32.gmra.mxu0 %v427
    %v452 = vpop.f32.mrf.mxu0
    %v453 = vadd.f32 0.0, %v452
    %454 = vmatmul.f32.gmra.mxu0 %v429
    %v455 = vpop.f32.mrf.mxu0
    %v456 = vadd.f32 0.0, %v455
    %457 = vdwg.mxu0
    %v458 = vmul.f32 %v453, 0.35355338
    %v459 = vmul.f32 %v456, 0.35355338
    %v460 = vadd.f32 %v458, %v40
    %v461 = vadd.f32 %v459, %v41
    %v462 = vsel %vm367, %v460, -inf
    %463 = vmax.xlane.f32.xlu0 %v462
    %v464 = vpop.xlane.xlu0 %463
    %v465 = vsel %vm367, %v461, -inf
    %466 = vmax.xlane.f32.xlu0 %v465
    %v467 = vpop.xlane.xlu0 %466
    %v468 = vsub.f32 %v460, %v464
    %v469 = vsub.f32 %v461, %v467
    %v470 = vmul.f32 %v468, 1.442695
    %v471 = vpow.pop %v470
    %v472 = vmul.f32 %v469, 1.442695
    %v473 = vpow.pop %v472
    %v474 = vsel %vm367, %v471, 0.0
    %475 = vadd.xlane.f32.xlu0 %v474
    %v476 = vpop.xlane.xlu0 %475
    %v477 = vsel %vm367, %v473, 0.0
    %478 = vadd.xlane.f32.xlu0 %v477
    %v479 = vpop.xlane.xlu0 %478
    %v480 = vrcp.pop %v476
    %v481 = vrcp.pop %v479
    %v482 = vmul.f32 %v471, %v480
    %v483 = vmul.f32 %v473, %v481
    %486 = vrot.lane.b32.xlu0 %v325, 120
    %v487 = vpop.permute.xlu0 %486
    %488 = vrot.lane.b32.xlu0 %v326, 120
    %v489 = vpop.permute.xlu0 %488
    %v493 = vsel %vm367, %v482, 0
    %v496 = vsel %vm367, %v483, 0
    %498 = vmatpush.msra.mxu0 0.0
    %499 = vmatpush.msra.mxu0 0.0
    %500 = vmatpush.msra.mxu0 0.0
    %501 = vmatpush.msra.mxu0 0.0
    %502 = vmatpush.msra.mxu0 0.0
    %503 = vmatpush.msra.mxu0 0.0
    %504 = vmatpush.msra.mxu0 0.0
    %505 = vmatpush.msra.mxu0 0.0
    %506 = vmatpush.msra.mxu0 0.0
    %507 = vmatpush.msra.mxu0 0.0
    %508 = vmatpush.msra.mxu0 0.0
    %509 = vmatpush.msra.mxu0 0.0
    %510 = vmatpush.msra.mxu0 0.0
    %511 = vmatpush.msra.mxu0 0.0
    %512 = vmatpush.msra.mxu0 %v489
    %513 = vmatpush.msra.mxu0 %v487
    %514 = vmatmul.f32.gmra.mxu0 %v493
    %v515 = vpop.f32.mrf.mxu0
    %v516 = vadd.f32 0.0, %v515
    %517 = vmatmul.f32.gmra.mxu0 %v496
    %v518 = vpop.f32.mrf.mxu0
    %v519 = vadd.f32 0.0, %v518
    %520 = vdwg.mxu0
    %521 = vrot.lane.b32.xlu0 %v319, 112
    %v522 = vpop.permute.xlu0 %521
    %523 = vrot.lane.b32.xlu0 %v320, 112
    %v524 = vpop.permute.xlu0 %523
    %525 = vrot.lane.b32.xlu0 %v322, 112
    %v526 = vpop.permute.xlu0 %525
    %527 = vrot.lane.b32.xlu0 %v323, 112
    %v528 = vpop.permute.xlu0 %527
    %v529 = vsel %vm327, %v522, 0
    %v531 = vsel %vm327, %v524, 0
    %v533 = vsel %vm327, %v526, 0
    %v535 = vsel %vm327, %v528, 0
    %537 = vmatpush.xpose.msra.mxu0 0.0
    %538 = vmatpush.xpose.msra.mxu0 0.0
    %539 = vmatpush.xpose.msra.mxu0 0.0
    %540 = vmatpush.xpose.msra.mxu0 0.0
    %541 = vmatpush.xpose.msra.mxu0 0.0
    %542 = vmatpush.xpose.msra.mxu0 0.0
    %543 = vmatpush.xpose.msra.mxu0 0.0
    %544 = vmatpush.xpose.msra.mxu0 0.0
    %545 = vmatpush.xpose.msra.mxu0 0.0
    %546 = vmatpush.xpose.msra.mxu0 0.0
    %547 = vmatpush.xpose.msra.mxu0 0.0
    %548 = vmatpush.xpose.msra.mxu0 0.0
    %549 = vmatpush.xpose.msra.mxu0 0.0
    %550 = vmatpush.xpose.msra.mxu0 0.0
    %551 = vmatpush.xpose.msra.mxu0 %v535
    %552 = vmatpush.xpose.msra.mxu0 %v533
    %553 = vmatmul.f32.gmra.mxu0 %v529
    %v554 = vpop.f32.mrf.mxu0
    %v555 = vadd.f32 0.0, %v554
    %556 = vmatmul.f32.gmra.mxu0 %v531
    %v557 = vpop.f32.mrf.mxu0
    %v558 = vadd.f32 0.0, %v557
    %559 = vdwg.mxu0
    %v560 = vmul.f32 %v555, 0.35355338
    %v561 = vmul.f32 %v558, 0.35355338
    %v562 = vadd.f32 %v560, %v40
    %v563 = vadd.f32 %v561, %v41
    %v564 = vsel %vm367, %v562, -inf
    %565 = vmax.xlane.f32.xlu0 %v564
    %v566 = vpop.xlane.xlu0 %565
    %v567 = vsel %vm367, %v563, -inf
    %568 = vmax.xlane.f32.xlu0 %v567
    %v569 = vpop.xlane.xlu0 %568
    %v570 = vsub.f32 %v562, %v566
    %v571 = vsub.f32 %v563, %v569
    %v572 = vmul.f32 %v570, 1.442695
    %v573 = vpow.pop %v572
    %v574 = vmul.f32 %v571, 1.442695
    %v575 = vpow.pop %v574
    %v576 = vsel %vm367, %v573, 0.0
    %577 = vadd.xlane.f32.xlu0 %v576
    %v578 = vpop.xlane.xlu0 %577
    %v579 = vsel %vm367, %v575, 0.0
    %580 = vadd.xlane.f32.xlu0 %v579
    %v581 = vpop.xlane.xlu0 %580
    %v582 = vrcp.pop %v578
    %v583 = vrcp.pop %v581
    %v584 = vmul.f32 %v573, %v582
    %v585 = vmul.f32 %v575, %v583
    %586 = vrot.lane.b32.xlu0 %v325, 112
    %v587 = vpop.permute.xlu0 %586
    %588 = vrot.lane.b32.xlu0 %v326, 112
    %v589 = vpop.permute.xlu0 %588
    %v593 = vsel %vm367, %v584, 0
    %v596 = vsel %vm367, %v585, 0
    %598 = vmatpush.msra.mxu0 0.0
    %599 = vmatpush.msra.mxu0 0.0
    %600 = vmatpush.msra.mxu0 0.0
    %601 = vmatpush.msra.mxu0 0.0
    %602 = vmatpush.msra.mxu0 0.0
    %603 = vmatpush.msra.mxu0 0.0
    %604 = vmatpush.msra.mxu0 0.0
    %605 = vmatpush.msra.mxu0 0.0
    %606 = vmatpush.msra.mxu0 0.0
    %607 = vmatpush.msra.mxu0 0.0
    %608 = vmatpush.msra.mxu0 0.0
    %609 = vmatpush.msra.mxu0 0.0
    %610 = vmatpush.msra.mxu0 0.0
    %611 = vmatpush.msra.mxu0 0.0
    %612 = vmatpush.msra.mxu0 %v589
    %613 = vmatpush.msra.mxu0 %v587
    %614 = vmatmul.f32.gmra.mxu0 %v593
    %v615 = vpop.f32.mrf.mxu0
    %v616 = vadd.f32 0.0, %v615
    %617 = vmatmul.f32.gmra.mxu0 %v596
    %v618 = vpop.f32.mrf.mxu0
    %v619 = vadd.f32 0.0, %v618
    %620 = vdwg.mxu0
    %621 = vrot.lane.b32.xlu0 %v319, 104
    %v622 = vpop.permute.xlu0 %621
    %623 = vrot.lane.b32.xlu0 %v320, 104
    %v624 = vpop.permute.xlu0 %623
    %625 = vrot.lane.b32.xlu0 %v322, 104
    %v626 = vpop.permute.xlu0 %625
    %627 = vrot.lane.b32.xlu0 %v323, 104
    %v628 = vpop.permute.xlu0 %627
    %v629 = vsel %vm327, %v622, 0
    %v631 = vsel %vm327, %v624, 0
    %v633 = vsel %vm327, %v626, 0
    %v635 = vsel %vm327, %v628, 0
    %637 = vmatpush.xpose.msra.mxu0 0.0
    %638 = vmatpush.xpose.msra.mxu0 0.0
    %639 = vmatpush.xpose.msra.mxu0 0.0
    %640 = vmatpush.xpose.msra.mxu0 0.0
    %641 = vmatpush.xpose.msra.mxu0 0.0
    %642 = vmatpush.xpose.msra.mxu0 0.0
    %643 = vmatpush.xpose.msra.mxu0 0.0
    %644 = vmatpush.xpose.msra.mxu0 0.0
    %645 = vmatpush.xpose.msra.mxu0 0.0
    %646 = vmatpush.xpose.msra.mxu0 0.0
    %647 = vmatpush.xpose.msra.mxu0 0.0
    %648 = vmatpush.xpose.msra.mxu0 0.0
    %649 = vmatpush.xpose.msra.mxu0 0.0
    %650 = vmatpush.xpose.msra.mxu0 0.0
    %651 = vmatpush.xpose.msra.mxu0 %v635
    %652 = vmatpush.xpose.msra.mxu0 %v633
    %653 = vmatmul.f32.gmra.mxu0 %v629
    %v654 = vpop.f32.mrf.mxu0
    %v655 = vadd.f32 0.0, %v654
    %656 = vmatmul.f32.gmra.mxu0 %v631
    %v657 = vpop.f32.mrf.mxu0
    %v658 = vadd.f32 0.0, %v657
    %659 = vdwg.mxu0
    %v660 = vmul.f32 %v655, 0.35355338
    %v661 = vmul.f32 %v658, 0.35355338
    %v662 = vadd.f32 %v660, %v40
    %v663 = vadd.f32 %v661, %v41
    %v664 = vsel %vm367, %v662, -inf
    %665 = vmax.xlane.f32.xlu0 %v664
    %v666 = vpop.xlane.xlu0 %665
    %v667 = vsel %vm367, %v663, -inf
    %668 = vmax.xlane.f32.xlu0 %v667
    %v669 = vpop.xlane.xlu0 %668
    %v670 = vsub.f32 %v662, %v666
    %v671 = vsub.f32 %v663, %v669
    %v672 = vmul.f32 %v670, 1.442695
    %v673 = vpow.pop %v672
    %v674 = vmul.f32 %v671, 1.442695
    %v675 = vpow.pop %v674
    %v676 = vsel %vm367, %v673, 0.0
    %677 = vadd.xlane.f32.xlu0 %v676
    %v678 = vpop.xlane.xlu0 %677
    %v679 = vsel %vm367, %v675, 0.0
    %680 = vadd.xlane.f32.xlu0 %v679
    %v681 = vpop.xlane.xlu0 %680
    %v682 = vrcp.pop %v678
    %v683 = vrcp.pop %v681
    %v684 = vmul.f32 %v673, %v682
    %v685 = vmul.f32 %v675, %v683
    %686 = vrot.lane.b32.xlu0 %v325, 104
    %v687 = vpop.permute.xlu0 %686
    %688 = vrot.lane.b32.xlu0 %v326, 104
    %v689 = vpop.permute.xlu0 %688
    %v693 = vsel %vm367, %v684, 0
    %v696 = vsel %vm367, %v685, 0
    %698 = vmatpush.msra.mxu0 0.0
    %699 = vmatpush.msra.mxu0 0.0
    %700 = vmatpush.msra.mxu0 0.0
    %701 = vmatpush.msra.mxu0 0.0
    %702 = vmatpush.msra.mxu0 0.0
    %703 = vmatpush.msra.mxu0 0.0
    %704 = vmatpush.msra.mxu0 0.0
    %705 = vmatpush.msra.mxu0 0.0
    %706 = vmatpush.msra.mxu0 0.0
    %707 = vmatpush.msra.mxu0 0.0
    %708 = vmatpush.msra.mxu0 0.0
    %709 = vmatpush.msra.mxu0 0.0
    %710 = vmatpush.msra.mxu0 0.0
    %711 = vmatpush.msra.mxu0 0.0
    %712 = vmatpush.msra.mxu0 %v689
    %713 = vmatpush.msra.mxu0 %v687
    %714 = vmatmul.f32.gmra.mxu0 %v693
    %v715 = vpop.f32.mrf.mxu0
    %v716 = vadd.f32 0.0, %v715
    %717 = vmatmul.f32.gmra.mxu0 %v696
    %v718 = vpop.f32.mrf.mxu0
    %v719 = vadd.f32 0.0, %v718
    %720 = vdwg.mxu0
    %723 = vrot.lane.b32.xlu0 %v516, 8
    %v724 = vpop.permute.xlu0 %723
    %725 = vrot.lane.b32.xlu0 %v519, 8
    %v726 = vpop.permute.xlu0 %725
    %731 = vrot.lane.b32.xlu0 %v616, 16
    %v732 = vpop.permute.xlu0 %731
    %733 = vrot.lane.b32.xlu0 %v619, 16
    %v734 = vpop.permute.xlu0 %733
    %739 = vrot.lane.b32.xlu0 %v716, 24
    %v740 = vpop.permute.xlu0 %739
    %741 = vrot.lane.b32.xlu0 %v719, 24
    %v742 = vpop.permute.xlu0 %741
    %v745 = vsel %vm327, %v414, %v724
    %v746 = vsel %vm327, %v417, %v726
    %v747 = vsel %vm367, %v745, %v732
    %v748 = vsel %vm367, %v746, %v734
    %vm749 = vcmask 195584
    %v750 = vsel %vm749, %v747, %v740
    %v751 = vsel %vm749, %v748, %v742
    %vm752 = vcmask 261120
    %v753 = vsel %vm752, %v750, 0.0
    %v754 = vsel %vm752, %v751, 0.0
    %v755 = vpack.c.bf16 %v754, %v753
    %v756 = vperm.slane %v145, 3
    %v757 = vunpack.c.h.b16 %v98
    %v758 = vunpack.c.h.b16 %v101
    %v759 = vunpack.c.h.b16 %v104
    %v760 = vunpack.c.h.b16 %v107
    %v761 = vunpack.c.h.b16 %v110
    %v762 = vunpack.c.h.b16 %v113
    %v763 = vunpack.c.h.b16 %v116
    %v764 = vunpack.c.h.b16 %v119
    %v765 = vunpack.c.h.b16 %v122
    %v766 = vunpack.c.h.b16 %v125
    %v767 = vunpack.c.h.b16 %v128
    %v768 = vunpack.c.h.b16 %v131
    %v769 = vunpack.c.h.b16 %v134
    %v770 = vunpack.c.h.b16 %v137
    %v771 = vunpack.c.h.b16 %v140
    %v772 = vunpack.c.h.b16 %v143
    %v773 = vpack.c.b16 %v758, %v757
    %v774 = vpack.c.b16 %v760, %v759
    %v775 = vpack.c.b16 %v762, %v761
    %v776 = vpack.c.b16 %v764, %v763
    %v777 = vpack.c.b16 %v766, %v765
    %v778 = vpack.c.b16 %v768, %v767
    %v779 = vpack.c.b16 %v770, %v769
    %v780 = vpack.c.b16 %v772, %v771
    %789 = vmatpush.bf16.msra.mxu0 %v780
    %790 = vmatpush.bf16.msra.mxu0 %v779
    %791 = vmatpush.bf16.msra.mxu0 %v778
    %792 = vmatpush.bf16.msra.mxu0 %v777
    %793 = vmatpush.bf16.msra.mxu0 %v776
    %794 = vmatpush.bf16.msra.mxu0 %v775
    %795 = vmatpush.bf16.msra.mxu0 %v774
    %796 = vmatpush.bf16.msra.mxu0 %v773
    %797 = vmatmul.bf16.gmra.mxu0 %v755
    %v798 = vpop.f32.mrf.mxu0
    %v799 = vadd.f32 %v756, %v798
    %v800 = vpop.f32.mrf.mxu0
    %v801 = vadd.f32 %v756, %v800
    %802 = vdwg.mxu0
    %v803 = vadd.f32 %v799, %v95
    %v804 = vadd.f32 %v801, %v96
    %805 = vadd.xlane.f32.xlu0 %v803
    %v806 = vpop.xlane.xlu0 %805
    %807 = vadd.xlane.f32.xlu0 %v804
    %v808 = vpop.xlane.xlu0 %807
    %v809 = vmul.f32 %v806, 0.03125
    %v810 = vmul.f32 %v808, 0.03125
    %v811 = vmul.f32 %v803, %v803
    %v812 = vmul.f32 %v804, %v804
    %813 = vadd.xlane.f32.xlu0 %v811
    %v814 = vpop.xlane.xlu0 %813
    %815 = vadd.xlane.f32.xlu0 %v812
    %v816 = vpop.xlane.xlu0 %815
    %v817 = vmul.f32 %v814, 0.03125
    %v818 = vmul.f32 %v816, 0.03125
    %v819 = vmul.f32 %v809, %v809
    %v820 = vmul.f32 %v810, %v810
    %v821 = vsub.f32 %v817, %v819
    %v822 = vsub.f32 %v818, %v820
    %v823 = vmax.f32 %v821, 0.0
    %v824 = vmax.f32 %v822, 0.0
    %v825 = vsub.f32 %v803, %v809
    %v826 = vsub.f32 %v804, %v810
    %v827 = vadd.f32 %v823, 1e-05
    %v828 = vadd.f32 %v824, 1e-05
    %v829 = vrsqrt.pop %v827
    %v830 = vmul.f32 %v829, %v827
    %v831 = vmul.f32 %v830, %v829
    %v832 = vmul.f32 0.5, %v831
    %v833 = vsub.f32 1.5, %v832
    %v834 = vmul.f32 %v829, %v833
    %vm835 = vweird.f32 %v827
    %vm836 = vweird.f32 %v829
    %vm837 = vmor %vm835, %vm836
    %v838 = vsel %vm837, %v829, %v834
    %v839 = vrsqrt.pop %v828
    %v840 = vmul.f32 %v839, %v828
    %v841 = vmul.f32 %v840, %v839
    %v842 = vmul.f32 0.5, %v841
    %v843 = vsub.f32 1.5, %v842
    %v844 = vmul.f32 %v839, %v843
    %vm845 = vweird.f32 %v828
    %vm846 = vweird.f32 %v839
    %vm847 = vmor %vm845, %vm846
    %v848 = vsel %vm847, %v839, %v844
    %v849 = vmul.f32 %v825, %v838
    %v850 = vmul.f32 %v826, %v848
    %v851 = vperm.slane %v145, 4
    %v852 = vmul.f32 %v849, %v851
    %v853 = vmul.f32 %v850, %v851
    %v854 = vperm.slane %v145, 5
    %v855 = vadd.f32 %v852, %v854
    %v856 = vadd.f32 %v853, %v854
    %v857 = vpack.c.bf16 %v856, %v855
    %v858 = vperm.slane %v145, 6
    %v875 = vunpack.c.l.b16 %v99
    %v876 = vunpack.c.l.b16 %v102
    %v877 = vunpack.c.l.b16 %v105
    %v878 = vunpack.c.l.b16 %v108
    %v879 = vunpack.c.l.b16 %v111
    %v880 = vunpack.c.l.b16 %v114
    %v881 = vunpack.c.l.b16 %v117
    %v882 = vunpack.c.l.b16 %v120
    %v883 = vunpack.c.l.b16 %v123
    %v884 = vunpack.c.l.b16 %v126
    %v885 = vunpack.c.l.b16 %v129
    %v886 = vunpack.c.l.b16 %v132
    %v887 = vunpack.c.l.b16 %v135
    %v888 = vunpack.c.l.b16 %v138
    %v889 = vunpack.c.l.b16 %v141
    %v890 = vunpack.c.l.b16 %v144
    %v891 = vpack.c.b16 %v876, %v875
    %v892 = vpack.c.b16 %v878, %v877
    %v893 = vpack.c.b16 %v880, %v879
    %v894 = vpack.c.b16 %v882, %v881
    %v895 = vpack.c.b16 %v884, %v883
    %v896 = vpack.c.b16 %v886, %v885
    %v897 = vpack.c.b16 %v888, %v887
    %v898 = vpack.c.b16 %v890, %v889
    %907 = vmatpush.bf16.msra.mxu0 %v898
    %908 = vmatpush.bf16.msra.mxu0 %v897
    %909 = vmatpush.bf16.msra.mxu0 %v896
    %910 = vmatpush.bf16.msra.mxu0 %v895
    %911 = vmatpush.bf16.msra.mxu0 %v894
    %912 = vmatpush.bf16.msra.mxu0 %v893
    %913 = vmatpush.bf16.msra.mxu0 %v892
    %914 = vmatpush.bf16.msra.mxu0 %v891
    %915 = vmatmul.bf16.gmra.mxu0 %v857
    %v916 = vpop.f32.mrf.mxu0
    %v917 = vadd.f32 %v858, %v916
    %v918 = vpop.f32.mrf.mxu0
    %v919 = vadd.f32 %v858, %v918
    %920 = vdwg.mxu0
    %v921 = vmul.f32 %v917, 0.5
    %v922 = vmul.f32 %v919, 0.5
    %v923 = vmul.f32 %v917, 0.044715
    %v924 = vmul.f32 %v919, 0.044715
    %v925 = vmul.f32 %v923, %v917
    %v926 = vmul.f32 %v924, %v919
    %v927 = vmul.f32 %v925, %v917
    %v928 = vmul.f32 %v926, %v919
    %v929 = vadd.f32 %v917, %v927
    %v930 = vadd.f32 %v919, %v928
    %v931 = vmul.f32 %v929, 0.7978846
    %v932 = vmul.f32 %v930, 0.7978846
    %v933 = vtanh.pop %v931
    %v934 = vtanh.pop %v932
    %v935 = vadd.f32 %v933, 1.0
    %v936 = vadd.f32 %v934, 1.0
    %v937 = vmul.f32 %v921, %v935
    %v938 = vmul.f32 %v922, %v936
    %v939 = vpack.c.bf16 %v938, %v937
    %v940 = vperm.slane %v145, 7
    %v941 = vunpack.c.h.b16 %v99
    %v942 = vunpack.c.h.b16 %v102
    %v943 = vunpack.c.h.b16 %v105
    %v944 = vunpack.c.h.b16 %v108
    %v945 = vunpack.c.h.b16 %v111
    %v946 = vunpack.c.h.b16 %v114
    %v947 = vunpack.c.h.b16 %v117
    %v948 = vunpack.c.h.b16 %v120
    %v949 = vunpack.c.h.b16 %v123
    %v950 = vunpack.c.h.b16 %v126
    %v951 = vunpack.c.h.b16 %v129
    %v952 = vunpack.c.h.b16 %v132
    %v953 = vunpack.c.h.b16 %v135
    %v954 = vunpack.c.h.b16 %v138
    %v955 = vunpack.c.h.b16 %v141
    %v956 = vunpack.c.h.b16 %v144
    %v957 = vpack.c.b16 %v942, %v941
    %v958 = vpack.c.b16 %v944, %v943
    %v959 = vpack.c.b16 %v946, %v945
    %v960 = vpack.c.b16 %v948, %v947
    %v961 = vpack.c.b16 %v950, %v949
    %v962 = vpack.c.b16 %v952, %v951
    %v963 = vpack.c.b16 %v954, %v953
    %v964 = vpack.c.b16 %v956, %v955
    %973 = vmatpush.bf16.msra.mxu0 %v964
    %974 = vmatpush.bf16.msra.mxu0 %v963
    %975 = vmatpush.bf16.msra.mxu0 %v962
    %976 = vmatpush.bf16.msra.mxu0 %v961
    %977 = vmatpush.bf16.msra.mxu0 %v960
    %978 = vmatpush.bf16.msra.mxu0 %v959
    %979 = vmatpush.bf16.msra.mxu0 %v958
    %980 = vmatpush.bf16.msra.mxu0 %v957
    %981 = vmatmul.bf16.gmra.mxu0 %v939
    %v982 = vpop.f32.mrf.mxu0
    %v983 = vadd.f32 %v940, %v982
    %v984 = vpop.f32.mrf.mxu0
    %v985 = vadd.f32 %v940, %v984
    %986 = vdwg.mxu0
    %v987 = vadd.f32 %v983, %v855
    %v988 = vadd.f32 %v985, %v856
    %989 = vadd.xlane.f32.xlu0 %v987
    %v990 = vpop.xlane.xlu0 %989
    %991 = vadd.xlane.f32.xlu0 %v988
    %v992 = vpop.xlane.xlu0 %991
    %v993 = vmul.f32 %v990, 0.03125
    %v994 = vmul.f32 %v992, 0.03125
    %v995 = vmul.f32 %v987, %v987
    %v996 = vmul.f32 %v988, %v988
    %997 = vadd.xlane.f32.xlu0 %v995
    %v998 = vpop.xlane.xlu0 %997
    %999 = vadd.xlane.f32.xlu0 %v996
    %v1000 = vpop.xlane.xlu0 %999
    %v1001 = vmul.f32 %v998, 0.03125
    %v1002 = vmul.f32 %v1000, 0.03125
    %v1003 = vmul.f32 %v993, %v993
    %v1004 = vmul.f32 %v994, %v994
    %v1005 = vsub.f32 %v1001, %v1003
    %v1006 = vsub.f32 %v1002, %v1004
    %v1007 = vmax.f32 %v1005, 0.0
    %v1008 = vmax.f32 %v1006, 0.0
    %v1009 = vsub.f32 %v987, %v993
    %v1010 = vsub.f32 %v988, %v994
    %v1011 = vadd.f32 %v1007, 1e-05
    %v1012 = vadd.f32 %v1008, 1e-05
    %v1013 = vrsqrt.pop %v1011
    %v1014 = vmul.f32 %v1013, %v1011
    %v1015 = vmul.f32 %v1014, %v1013
    %v1016 = vmul.f32 0.5, %v1015
    %v1017 = vsub.f32 1.5, %v1016
    %v1018 = vmul.f32 %v1013, %v1017
    %vm1019 = vweird.f32 %v1011
    %vm1020 = vweird.f32 %v1013
    %vm1021 = vmor %vm1019, %vm1020
    %v1022 = vsel %vm1021, %v1013, %v1018
    %v1023 = vrsqrt.pop %v1012
    %v1024 = vmul.f32 %v1023, %v1012
    %v1025 = vmul.f32 %v1024, %v1023
    %v1026 = vmul.f32 0.5, %v1025
    %v1027 = vsub.f32 1.5, %v1026
    %v1028 = vmul.f32 %v1023, %v1027
    %vm1029 = vweird.f32 %v1012
    %vm1030 = vweird.f32 %v1023
    %vm1031 = vmor %vm1029, %vm1030
    %v1032 = vsel %vm1031, %v1023, %v1028
    %v1033 = vmul.f32 %v1009, %v1022
    %v1034 = vmul.f32 %v1010, %v1032
    %v1035 = vperm.slane %v146, 0
    %v1036 = vmul.f32 %v1033, %v1035
    %v1037 = vmul.f32 %v1034, %v1035
    %v1038 = vperm.slane %v146, 1
    %v1039 = vadd.f32 %v1036, %v1038
    %v1040 = vadd.f32 %v1037, %v1038
    %s1041 = scalar_lea.vmem [#allocation2], 384
    %v1042 = vld [vmem:[%s1041] sm:$0xff]
    %v1043 = vld [vmem:[%s1041 + $0x8] sm:$0xff]
    %v1044 = vld [vmem:[%s1041 + $0x10] sm:$0xff]
    %v1045 = vld [vmem:[%s1041 + $0x18] sm:$0xff]
    %v1046 = vld [vmem:[%s1041 + $0x20] sm:$0xff]
    %v1047 = vld [vmem:[%s1041 + $0x28] sm:$0xff]
    %v1048 = vld [vmem:[%s1041 + $0x30] sm:$0xff]
    %v1049 = vld [vmem:[%s1041 + $0x38] sm:$0xff]
    %v1050 = vld [vmem:[%s1041 + $0x40] sm:$0xff]
    %v1051 = vld [vmem:[%s1041 + $0x48] sm:$0xff]
    %v1052 = vld [vmem:[%s1041 + $0x50] sm:$0xff]
    %v1053 = vld [vmem:[%s1041 + $0x58] sm:$0xff]
    %v1054 = vld [vmem:[%s1041 + $0x60] sm:$0xff]
    %v1055 = vld [vmem:[%s1041 + $0x68] sm:$0xff]
    %v1056 = vld [vmem:[%s1041 + $0x70] sm:$0xff]
    %v1057 = vld [vmem:[%s1041 + $0x78] sm:$0xff]
    %v1058 = vld [vmem:[%s1041 + $0x80] sm:$0xff]
    %v1059 = vld [vmem:[%s1041 + $0x88] sm:$0xff]
    %v1060 = vld [vmem:[%s1041 + $0x90] sm:$0xff]
    %v1061 = vld [vmem:[%s1041 + $0x98] sm:$0xff]
    %v1062 = vld [vmem:[%s1041 + $0xa0] sm:$0xff]
    %v1063 = vld [vmem:[%s1041 + $0xa8] sm:$0xff]
    %v1064 = vld [vmem:[%s1041 + $0xb0] sm:$0xff]
    %v1065 = vld [vmem:[%s1041 + $0xb8] sm:$0xff]
    %v1066 = vld [vmem:[%s1041 + $0xc0] sm:$0xff]
    %v1067 = vld [vmem:[%s1041 + $0xc8] sm:$0xff]
    %v1068 = vld [vmem:[%s1041 + $0xd0] sm:$0xff]
    %v1069 = vld [vmem:[%s1041 + $0xd8] sm:$0xff]
    %v1070 = vld [vmem:[%s1041 + $0xe0] sm:$0xff]
    %v1071 = vld [vmem:[%s1041 + $0xe8] sm:$0xff]
    %v1072 = vld [vmem:[%s1041 + $0xf0] sm:$0xff]
    %v1073 = vld [vmem:[%s1041 + $0xf8] sm:$0xff]
    %v1074 = vld [vmem:[%s1041 + $0x100] sm:$0xff]
    %v1075 = vld [vmem:[%s1041 + $0x108] sm:$0xff]
    %v1076 = vld [vmem:[%s1041 + $0x110] sm:$0xff]
    %v1077 = vld [vmem:[%s1041 + $0x118] sm:$0xff]
    %v1078 = vld [vmem:[%s1041 + $0x120] sm:$0xff]
    %v1079 = vld [vmem:[%s1041 + $0x128] sm:$0xff]
    %v1080 = vld [vmem:[%s1041 + $0x130] sm:$0xff]
    %v1081 = vld [vmem:[%s1041 + $0x138] sm:$0xff]
    %v1082 = vld [vmem:[%s1041 + $0x140] sm:$0xff]
    %v1083 = vld [vmem:[%s1041 + $0x148] sm:$0xff]
    %v1084 = vld [vmem:[%s1041 + $0x150] sm:$0xff]
    %v1085 = vld [vmem:[%s1041 + $0x158] sm:$0xff]
    %v1086 = vld [vmem:[%s1041 + $0x160] sm:$0xff]
    %v1087 = vld [vmem:[%s1041 + $0x168] sm:$0xff]
    %v1088 = vld [vmem:[%s1041 + $0x170] sm:$0xff]
    %v1089 = vld [vmem:[%s1041 + $0x178] sm:$0xff]
    %s1090 = scalar_lea.vmem %s3, 16
    %v1091 = vld [vmem:[%s1090] sm:$0xff]
    %v1092 = vld [vmem:[%s1090 + $0x8] sm:$0x3]
    %v1093 = vpack.c.bf16 %v1040, %v1039
    %v1126 = vunpack.c.l.b16 %v1042
    %v1127 = vunpack.c.h.b16 %v1042
    %v1128 = vunpack.c.l.b16 %v1043
    %v1129 = vunpack.c.l.b16 %v1045
    %v1130 = vunpack.c.h.b16 %v1045
    %v1131 = vunpack.c.l.b16 %v1046
    %v1132 = vunpack.c.l.b16 %v1048
    %v1133 = vunpack.c.h.b16 %v1048
    %v1134 = vunpack.c.l.b16 %v1049
    %v1135 = vunpack.c.l.b16 %v1051
    %v1136 = vunpack.c.h.b16 %v1051
    %v1137 = vunpack.c.l.b16 %v1052
    %v1138 = vunpack.c.l.b16 %v1054
    %v1139 = vunpack.c.h.b16 %v1054
    %v1140 = vunpack.c.l.b16 %v1055
    %v1141 = vunpack.c.l.b16 %v1057
    %v1142 = vunpack.c.h.b16 %v1057
    %v1143 = vunpack.c.l.b16 %v1058
    %v1144 = vunpack.c.l.b16 %v1060
    %v1145 = vunpack.c.h.b16 %v1060
    %v1146 = vunpack.c.l.b16 %v1061
    %v1147 = vunpack.c.l.b16 %v1063
    %v1148 = vunpack.c.h.b16 %v1063
    %v1149 = vunpack.c.l.b16 %v1064
    %v1150 = vunpack.c.l.b16 %v1066
    %v1151 = vunpack.c.h.b16 %v1066
    %v1152 = vunpack.c.l.b16 %v1067
    %v1153 = vunpack.c.l.b16 %v1069
    %v1154 = vunpack.c.h.b16 %v1069
    %v1155 = vunpack.c.l.b16 %v1070
    %v1156 = vunpack.c.l.b16 %v1072
    %v1157 = vunpack.c.h.b16 %v1072
    %v1158 = vunpack.c.l.b16 %v1073
    %v1159 = vunpack.c.l.b16 %v1075
    %v1160 = vunpack.c.h.b16 %v1075
    %v1161 = vunpack.c.l.b16 %v1076
    %v1162 = vunpack.c.l.b16 %v1078
    %v1163 = vunpack.c.h.b16 %v1078
    %v1164 = vunpack.c.l.b16 %v1079
    %v1165 = vunpack.c.l.b16 %v1081
    %v1166 = vunpack.c.h.b16 %v1081
    %v1167 = vunpack.c.l.b16 %v1082
    %v1168 = vunpack.c.l.b16 %v1084
    %v1169 = vunpack.c.h.b16 %v1084
    %v1170 = vunpack.c.l.b16 %v1085
    %v1171 = vunpack.c.l.b16 %v1087
    %v1172 = vunpack.c.h.b16 %v1087
    %v1173 = vunpack.c.l.b16 %v1088
    %v1174 = vpack.c.b16 %v1129, %v1126
    %v1175 = vpack.c.b16 %v1130, %v1127
    %v1176 = vpack.c.b16 %v1131, %v1128
    %v1177 = vpack.c.b16 %v1135, %v1132
    %v1178 = vpack.c.b16 %v1136, %v1133
    %v1179 = vpack.c.b16 %v1137, %v1134
    %v1180 = vpack.c.b16 %v1141, %v1138
    %v1181 = vpack.c.b16 %v1142, %v1139
    %v1182 = vpack.c.b16 %v1143, %v1140
    %v1183 = vpack.c.b16 %v1147, %v1144
    %v1184 = vpack.c.b16 %v1148, %v1145
    %v1185 = vpack.c.b16 %v1149, %v1146
    %v1186 = vpack.c.b16 %v1153, %v1150
    %v1187 = vpack.c.b16 %v1154, %v1151
    %v1188 = vpack.c.b16 %v1155, %v1152
    %v1189 = vpack.c.b16 %v1159, %v1156
    %v1190 = vpack.c.b16 %v1160, %v1157
    %v1191 = vpack.c.b16 %v1161, %v1158
    %v1192 = vpack.c.b16 %v1165, %v1162
    %v1193 = vpack.c.b16 %v1166, %v1163
    %v1194 = vpack.c.b16 %v1167, %v1164
    %v1195 = vpack.c.b16 %v1171, %v1168
    %v1196 = vpack.c.b16 %v1172, %v1169
    %v1197 = vpack.c.b16 %v1173, %v1170
    %1222 = vmatpush.bf16.msra.mxu0 %v1195
    %1223 = vmatpush.bf16.msra.mxu0 %v1192
    %1224 = vmatpush.bf16.msra.mxu0 %v1189
    %1225 = vmatpush.bf16.msra.mxu0 %v1186
    %1226 = vmatpush.bf16.msra.mxu0 %v1183
    %1227 = vmatpush.bf16.msra.mxu0 %v1180
    %1228 = vmatpush.bf16.msra.mxu0 %v1177
    %1229 = vmatpush.bf16.msra.mxu0 %v1174
    %1230 = vmatmul.bf16.gmra.mxu0 %v1093
    %v1231 = vpop.f32.mrf.mxu0
    %v1232 = vadd.f32 0.0, %v1231
    %v1233 = vpop.f32.mrf.mxu0
    %v1234 = vadd.f32 0.0, %v1233
    %1235 = vdwg.mxu0
    %1236 = vmatpush.bf16.msra.mxu0 %v1196
    %1237 = vmatpush.bf16.msra.mxu0 %v1193
    %1238 = vmatpush.bf16.msra.mxu0 %v1190
    %1239 = vmatpush.bf16.msra.mxu0 %v1187
    %1240 = vmatpush.bf16.msra.mxu0 %v1184
    %1241 = vmatpush.bf16.msra.mxu0 %v1181
    %1242 = vmatpush.bf16.msra.mxu0 %v1178
    %1243 = vmatpush.bf16.msra.mxu0 %v1175
    %1244 = vmatmul.bf16.gmra.mxu0 %v1093
    %v1245 = vpop.f32.mrf.mxu0
    %v1246 = vadd.f32 0.0, %v1245
    %v1247 = vpop.f32.mrf.mxu0
    %v1248 = vadd.f32 0.0, %v1247
    %1249 = vdwg.mxu0
    %1250 = vmatpush.bf16.msra.mxu0 %v1197
    %1251 = vmatpush.bf16.msra.mxu0 %v1194
    %1252 = vmatpush.bf16.msra.mxu0 %v1191
    %1253 = vmatpush.bf16.msra.mxu0 %v1188
    %1254 = vmatpush.bf16.msra.mxu0 %v1185
    %1255 = vmatpush.bf16.msra.mxu0 %v1182
    %1256 = vmatpush.bf16.msra.mxu0 %v1179
    %1257 = vmatpush.bf16.msra.mxu0 %v1176
    %1258 = vmatmul.bf16.gmra.mxu0 %v1093
    %v1259 = vpop.f32.mrf.mxu0
    %v1260 = vadd.f32 0.0, %v1259
    %v1261 = vpop.f32.mrf.mxu0
    %v1262 = vadd.f32 0.0, %v1261
    %1263 = vdwg.mxu0
    %v1264 = vperm.slane %v1091, 0
    %v1265 = vadd.f32 %v1232, %v1264
    %v1266 = vadd.f32 %v1234, %v1264
    %v1267 = vperm.slane %v1091, 1
    %v1268 = vadd.f32 %v1246, %v1267
    %v1269 = vadd.f32 %v1248, %v1267
    %v1270 = vperm.slane %v1091, 2
    %v1271 = vadd.f32 %v1260, %v1270
    %v1272 = vadd.f32 %v1262, %v1270
    %v1274 = vsel %vm327, %v1265, 0
    %v1277 = vsel %vm327, %v1266, 0
    %v1280 = vsel %vm327, %v1268, 0
    %v1283 = vsel %vm327, %v1269, 0
    %1285 = vmatpush.xpose.msra.mxu0 0.0
    %1286 = vmatpush.xpose.msra.mxu0 0.0
    %1287 = vmatpush.xpose.msra.mxu0 0.0
    %1288 = vmatpush.xpose.msra.mxu0 0.0
    %1289 = vmatpush.xpose.msra.mxu0 0.0
    %1290 = vmatpush.xpose.msra.mxu0 0.0
    %1291 = vmatpush.xpose.msra.mxu0 0.0
    %1292 = vmatpush.xpose.msra.mxu0 0.0
    %1293 = vmatpush.xpose.msra.mxu0 0.0
    %1294 = vmatpush.xpose.msra.mxu0 0.0
    %1295 = vmatpush.xpose.msra.mxu0 0.0
    %1296 = vmatpush.xpose.msra.mxu0 0.0
    %1297 = vmatpush.xpose.msra.mxu0 0.0
    %1298 = vmatpush.xpose.msra.mxu0 0.0
    %1299 = vmatpush.xpose.msra.mxu0 %v1283
    %1300 = vmatpush.xpose.msra.mxu0 %v1280
    %1301 = vmatmul.f32.gmra.mxu0 %v1274
    %v1302 = vpop.f32.mrf.mxu0
    %v1303 = vadd.f32 0.0, %v1302
    %1304 = vmatmul.f32.gmra.mxu0 %v1277
    %v1305 = vpop.f32.mrf.mxu0
    %v1306 = vadd.f32 0.0, %v1305
    %1307 = vdwg.mxu0
    %v1308 = vmul.f32 %v1303, 0.35355338
    %v1309 = vmul.f32 %v1306, 0.35355338
    %v1310 = vadd.f32 %v1308, %v40
    %v1311 = vadd.f32 %v1309, %v41
    %v1312 = vsel %vm367, %v1310, -inf
    %1313 = vmax.xlane.f32.xlu0 %v1312
    %v1314 = vpop.xlane.xlu0 %1313
    %v1315 = vsel %vm367, %v1311, -inf
    %1316 = vmax.xlane.f32.xlu0 %v1315
    %v1317 = vpop.xlane.xlu0 %1316
    %v1318 = vsub.f32 %v1310, %v1314
    %v1319 = vsub.f32 %v1311, %v1317
    %v1320 = vmul.f32 %v1318, 1.442695
    %v1321 = vpow.pop %v1320
    %v1322 = vmul.f32 %v1319, 1.442695
    %v1323 = vpow.pop %v1322
    %v1324 = vsel %vm367, %v1321, 0.0
    %1325 = vadd.xlane.f32.xlu0 %v1324
    %v1326 = vpop.xlane.xlu0 %1325
    %v1327 = vsel %vm367, %v1323, 0.0
    %1328 = vadd.xlane.f32.xlu0 %v1327
    %v1329 = vpop.xlane.xlu0 %1328
    %v1330 = vrcp.pop %v1326
    %v1331 = vrcp.pop %v1329
    %v1332 = vmul.f32 %v1321, %v1330
    %v1333 = vmul.f32 %v1323, %v1331
    %v1335 = vsel %vm367, %v1332, 0
    %v1338 = vsel %vm367, %v1333, 0
    %1340 = vmatpush.msra.mxu0 0.0
    %1341 = vmatpush.msra.mxu0 0.0
    %1342 = vmatpush.msra.mxu0 0.0
    %1343 = vmatpush.msra.mxu0 0.0
    %1344 = vmatpush.msra.mxu0 0.0
    %1345 = vmatpush.msra.mxu0 0.0
    %1346 = vmatpush.msra.mxu0 0.0
    %1347 = vmatpush.msra.mxu0 0.0
    %1348 = vmatpush.msra.mxu0 0.0
    %1349 = vmatpush.msra.mxu0 0.0
    %1350 = vmatpush.msra.mxu0 0.0
    %1351 = vmatpush.msra.mxu0 0.0
    %1352 = vmatpush.msra.mxu0 0.0
    %1353 = vmatpush.msra.mxu0 0.0
    %1354 = vmatpush.msra.mxu0 %v1272
    %1355 = vmatpush.msra.mxu0 %v1271
    %1356 = vmatmul.f32.gmra.mxu0 %v1335
    %v1357 = vpop.f32.mrf.mxu0
    %v1358 = vadd.f32 0.0, %v1357
    %1359 = vmatmul.f32.gmra.mxu0 %v1338
    %v1360 = vpop.f32.mrf.mxu0
    %v1361 = vadd.f32 0.0, %v1360
    %1362 = vdwg.mxu0
    %1363 = vrot.lane.b32.xlu0 %v1265, 120
    %v1364 = vpop.permute.xlu0 %1363
    %1365 = vrot.lane.b32.xlu0 %v1266, 120
    %v1366 = vpop.permute.xlu0 %1365
    %1367 = vrot.lane.b32.xlu0 %v1268, 120
    %v1368 = vpop.permute.xlu0 %1367
    %1369 = vrot.lane.b32.xlu0 %v1269, 120
    %v1370 = vpop.permute.xlu0 %1369
    %v1371 = vsel %vm327, %v1364, 0
    %v1373 = vsel %vm327, %v1366, 0
    %v1375 = vsel %vm327, %v1368, 0
    %v1377 = vsel %vm327, %v1370, 0
    %1379 = vmatpush.xpose.msra.mxu0 0.0
    %1380 = vmatpush.xpose.msra.mxu0 0.0
    %1381 = vmatpush.xpose.msra.mxu0 0.0
    %1382 = vmatpush.xpose.msra.mxu0 0.0
    %1383 = vmatpush.xpose.msra.mxu0 0.0
    %1384 = vmatpush.xpose.msra.mxu0 0.0
    %1385 = vmatpush.xpose.msra.mxu0 0.0
    %1386 = vmatpush.xpose.msra.mxu0 0.0
    %1387 = vmatpush.xpose.msra.mxu0 0.0
    %1388 = vmatpush.xpose.msra.mxu0 0.0
    %1389 = vmatpush.xpose.msra.mxu0 0.0
    %1390 = vmatpush.xpose.msra.mxu0 0.0
    %1391 = vmatpush.xpose.msra.mxu0 0.0
    %1392 = vmatpush.xpose.msra.mxu0 0.0
    %1393 = vmatpush.xpose.msra.mxu0 %v1377
    %1394 = vmatpush.xpose.msra.mxu0 %v1375
    %1395 = vmatmul.f32.gmra.mxu0 %v1371
    %v1396 = vpop.f32.mrf.mxu0
    %v1397 = vadd.f32 0.0, %v1396
    %1398 = vmatmul.f32.gmra.mxu0 %v1373
    %v1399 = vpop.f32.mrf.mxu0
    %v1400 = vadd.f32 0.0, %v1399
    %1401 = vdwg.mxu0
    %v1402 = vmul.f32 %v1397, 0.35355338
    %v1403 = vmul.f32 %v1400, 0.35355338
    %v1404 = vadd.f32 %v1402, %v40
    %v1405 = vadd.f32 %v1403, %v41
    %v1406 = vsel %vm367, %v1404, -inf
    %1407 = vmax.xlane.f32.xlu0 %v1406
    %v1408 = vpop.xlane.xlu0 %1407
    %v1409 = vsel %vm367, %v1405, -inf
    %1410 = vmax.xlane.f32.xlu0 %v1409
    %v1411 = vpop.xlane.xlu0 %1410
    %v1412 = vsub.f32 %v1404, %v1408
    %v1413 = vsub.f32 %v1405, %v1411
    %v1414 = vmul.f32 %v1412, 1.442695
    %v1415 = vpow.pop %v1414
    %v1416 = vmul.f32 %v1413, 1.442695
    %v1417 = vpow.pop %v1416
    %v1418 = vsel %vm367, %v1415, 0.0
    %1419 = vadd.xlane.f32.xlu0 %v1418
    %v1420 = vpop.xlane.xlu0 %1419
    %v1421 = vsel %vm367, %v1417, 0.0
    %1422 = vadd.xlane.f32.xlu0 %v1421
    %v1423 = vpop.xlane.xlu0 %1422
    %v1424 = vrcp.pop %v1420
    %v1425 = vrcp.pop %v1423
    %v1426 = vmul.f32 %v1415, %v1424
    %v1427 = vmul.f32 %v1417, %v1425
    %1430 = vrot.lane.b32.xlu0 %v1271, 120
    %v1431 = vpop.permute.xlu0 %1430
    %1432 = vrot.lane.b32.xlu0 %v1272, 120
    %v1433 = vpop.permute.xlu0 %1432
    %v1437 = vsel %vm367, %v1426, 0
    %v1440 = vsel %vm367, %v1427, 0
    %1442 = vmatpush.msra.mxu0 0.0
    %1443 = vmatpush.msra.mxu0 0.0
    %1444 = vmatpush.msra.mxu0 0.0
    %1445 = vmatpush.msra.mxu0 0.0
    %1446 = vmatpush.msra.mxu0 0.0
    %1447 = vmatpush.msra.mxu0 0.0
    %1448 = vmatpush.msra.mxu0 0.0
    %1449 = vmatpush.msra.mxu0 0.0
    %1450 = vmatpush.msra.mxu0 0.0
    %1451 = vmatpush.msra.mxu0 0.0
    %1452 = vmatpush.msra.mxu0 0.0
    %1453 = vmatpush.msra.mxu0 0.0
    %1454 = vmatpush.msra.mxu0 0.0
    %1455 = vmatpush.msra.mxu0 0.0
    %1456 = vmatpush.msra.mxu0 %v1433
    %1457 = vmatpush.msra.mxu0 %v1431
    %1458 = vmatmul.f32.gmra.mxu0 %v1437
    %v1459 = vpop.f32.mrf.mxu0
    %v1460 = vadd.f32 0.0, %v1459
    %1461 = vmatmul.f32.gmra.mxu0 %v1440
    %v1462 = vpop.f32.mrf.mxu0
    %v1463 = vadd.f32 0.0, %v1462
    %1464 = vdwg.mxu0
    %1465 = vrot.lane.b32.xlu0 %v1265, 112
    %v1466 = vpop.permute.xlu0 %1465
    %1467 = vrot.lane.b32.xlu0 %v1266, 112
    %v1468 = vpop.permute.xlu0 %1467
    %1469 = vrot.lane.b32.xlu0 %v1268, 112
    %v1470 = vpop.permute.xlu0 %1469
    %1471 = vrot.lane.b32.xlu0 %v1269, 112
    %v1472 = vpop.permute.xlu0 %1471
    %v1473 = vsel %vm327, %v1466, 0
    %v1475 = vsel %vm327, %v1468, 0
    %v1477 = vsel %vm327, %v1470, 0
    %v1479 = vsel %vm327, %v1472, 0
    %1481 = vmatpush.xpose.msra.mxu0 0.0
    %1482 = vmatpush.xpose.msra.mxu0 0.0
    %1483 = vmatpush.xpose.msra.mxu0 0.0
    %1484 = vmatpush.xpose.msra.mxu0 0.0
    %1485 = vmatpush.xpose.msra.mxu0 0.0
    %1486 = vmatpush.xpose.msra.mxu0 0.0
    %1487 = vmatpush.xpose.msra.mxu0 0.0
    %1488 = vmatpush.xpose.msra.mxu0 0.0
    %1489 = vmatpush.xpose.msra.mxu0 0.0
    %1490 = vmatpush.xpose.msra.mxu0 0.0
    %1491 = vmatpush.xpose.msra.mxu0 0.0
    %1492 = vmatpush.xpose.msra.mxu0 0.0
    %1493 = vmatpush.xpose.msra.mxu0 0.0
    %1494 = vmatpush.xpose.msra.mxu0 0.0
    %1495 = vmatpush.xpose.msra.mxu0 %v1479
    %1496 = vmatpush.xpose.msra.mxu0 %v1477
    %1497 = vmatmul.f32.gmra.mxu0 %v1473
    %v1498 = vpop.f32.mrf.mxu0
    %v1499 = vadd.f32 0.0, %v1498
    %1500 = vmatmul.f32.gmra.mxu0 %v1475
    %v1501 = vpop.f32.mrf.mxu0
    %v1502 = vadd.f32 0.0, %v1501
    %1503 = vdwg.mxu0
    %v1504 = vmul.f32 %v1499, 0.35355338
    %v1505 = vmul.f32 %v1502, 0.35355338
    %v1506 = vadd.f32 %v1504, %v40
    %v1507 = vadd.f32 %v1505, %v41
    %v1508 = vsel %vm367, %v1506, -inf
    %1509 = vmax.xlane.f32.xlu0 %v1508
    %v1510 = vpop.xlane.xlu0 %1509
    %v1511 = vsel %vm367, %v1507, -inf
    %1512 = vmax.xlane.f32.xlu0 %v1511
    %v1513 = vpop.xlane.xlu0 %1512
    %v1514 = vsub.f32 %v1506, %v1510
    %v1515 = vsub.f32 %v1507, %v1513
    %v1516 = vmul.f32 %v1514, 1.442695
    %v1517 = vpow.pop %v1516
    %v1518 = vmul.f32 %v1515, 1.442695
    %v1519 = vpow.pop %v1518
    %v1520 = vsel %vm367, %v1517, 0.0
    %1521 = vadd.xlane.f32.xlu0 %v1520
    %v1522 = vpop.xlane.xlu0 %1521
    %v1523 = vsel %vm367, %v1519, 0.0
    %1524 = vadd.xlane.f32.xlu0 %v1523
    %v1525 = vpop.xlane.xlu0 %1524
    %v1526 = vrcp.pop %v1522
    %v1527 = vrcp.pop %v1525
    %v1528 = vmul.f32 %v1517, %v1526
    %v1529 = vmul.f32 %v1519, %v1527
    %1530 = vrot.lane.b32.xlu0 %v1271, 112
    %v1531 = vpop.permute.xlu0 %1530
    %1532 = vrot.lane.b32.xlu0 %v1272, 112
    %v1533 = vpop.permute.xlu0 %1532
    %v1537 = vsel %vm367, %v1528, 0
    %v1540 = vsel %vm367, %v1529, 0
    %1542 = vmatpush.msra.mxu0 0.0
    %1543 = vmatpush.msra.mxu0 0.0
    %1544 = vmatpush.msra.mxu0 0.0
    %1545 = vmatpush.msra.mxu0 0.0
    %1546 = vmatpush.msra.mxu0 0.0
    %1547 = vmatpush.msra.mxu0 0.0
    %1548 = vmatpush.msra.mxu0 0.0
    %1549 = vmatpush.msra.mxu0 0.0
    %1550 = vmatpush.msra.mxu0 0.0
    %1551 = vmatpush.msra.mxu0 0.0
    %1552 = vmatpush.msra.mxu0 0.0
    %1553 = vmatpush.msra.mxu0 0.0
    %1554 = vmatpush.msra.mxu0 0.0
    %1555 = vmatpush.msra.mxu0 0.0
    %1556 = vmatpush.msra.mxu0 %v1533
    %1557 = vmatpush.msra.mxu0 %v1531
    %1558 = vmatmul.f32.gmra.mxu0 %v1537
    %v1559 = vpop.f32.mrf.mxu0
    %v1560 = vadd.f32 0.0, %v1559
    %1561 = vmatmul.f32.gmra.mxu0 %v1540
    %v1562 = vpop.f32.mrf.mxu0
    %v1563 = vadd.f32 0.0, %v1562
    %1564 = vdwg.mxu0
    %1565 = vrot.lane.b32.xlu0 %v1265, 104
    %v1566 = vpop.permute.xlu0 %1565
    %1567 = vrot.lane.b32.xlu0 %v1266, 104
    %v1568 = vpop.permute.xlu0 %1567
    %1569 = vrot.lane.b32.xlu0 %v1268, 104
    %v1570 = vpop.permute.xlu0 %1569
    %1571 = vrot.lane.b32.xlu0 %v1269, 104
    %v1572 = vpop.permute.xlu0 %1571
    %v1573 = vsel %vm327, %v1566, 0
    %v1575 = vsel %vm327, %v1568, 0
    %v1577 = vsel %vm327, %v1570, 0
    %v1579 = vsel %vm327, %v1572, 0
    %1581 = vmatpush.xpose.msra.mxu0 0.0
    %1582 = vmatpush.xpose.msra.mxu0 0.0
    %1583 = vmatpush.xpose.msra.mxu0 0.0
    %1584 = vmatpush.xpose.msra.mxu0 0.0
    %1585 = vmatpush.xpose.msra.mxu0 0.0
    %1586 = vmatpush.xpose.msra.mxu0 0.0
    %1587 = vmatpush.xpose.msra.mxu0 0.0
    %1588 = vmatpush.xpose.msra.mxu0 0.0
    %1589 = vmatpush.xpose.msra.mxu0 0.0
    %1590 = vmatpush.xpose.msra.mxu0 0.0
    %1591 = vmatpush.xpose.msra.mxu0 0.0
    %1592 = vmatpush.xpose.msra.mxu0 0.0
    %1593 = vmatpush.xpose.msra.mxu0 0.0
    %1594 = vmatpush.xpose.msra.mxu0 0.0
    %1595 = vmatpush.xpose.msra.mxu0 %v1579
    %1596 = vmatpush.xpose.msra.mxu0 %v1577
    %1597 = vmatmul.f32.gmra.mxu0 %v1573
    %v1598 = vpop.f32.mrf.mxu0
    %v1599 = vadd.f32 0.0, %v1598
    %1600 = vmatmul.f32.gmra.mxu0 %v1575
    %v1601 = vpop.f32.mrf.mxu0
    %v1602 = vadd.f32 0.0, %v1601
    %1603 = vdwg.mxu0
    %v1604 = vmul.f32 %v1599, 0.35355338
    %v1605 = vmul.f32 %v1602, 0.35355338
    %v1606 = vadd.f32 %v1604, %v40
    %v1607 = vadd.f32 %v1605, %v41
    %v1608 = vsel %vm367, %v1606, -inf
    %1609 = vmax.xlane.f32.xlu0 %v1608
    %v1610 = vpop.xlane.xlu0 %1609
    %v1611 = vsel %vm367, %v1607, -inf
    %1612 = vmax.xlane.f32.xlu0 %v1611
    %v1613 = vpop.xlane.xlu0 %1612
    %v1614 = vsub.f32 %v1606, %v1610
    %v1615 = vsub.f32 %v1607, %v1613
    %v1616 = vmul.f32 %v1614, 1.442695
    %v1617 = vpow.pop %v1616
    %v1618 = vmul.f32 %v1615, 1.442695
    %v1619 = vpow.pop %v1618
    %v1620 = vsel %vm367, %v1617, 0.0
    %1621 = vadd.xlane.f32.xlu0 %v1620
    %v1622 = vpop.xlane.xlu0 %1621
    %v1623 = vsel %vm367, %v1619, 0.0
    %1624 = vadd.xlane.f32.xlu0 %v1623
    %v1625 = vpop.xlane.xlu0 %1624
    %v1626 = vrcp.pop %v1622
    %v1627 = vrcp.pop %v1625
    %v1628 = vmul.f32 %v1617, %v1626
    %v1629 = vmul.f32 %v1619, %v1627
    %1630 = vrot.lane.b32.xlu0 %v1271, 104
    %v1631 = vpop.permute.xlu0 %1630
    %1632 = vrot.lane.b32.xlu0 %v1272, 104
    %v1633 = vpop.permute.xlu0 %1632
    %v1637 = vsel %vm367, %v1628, 0
    %v1640 = vsel %vm367, %v1629, 0
    %1642 = vmatpush.msra.mxu0 0.0
    %1643 = vmatpush.msra.mxu0 0.0
    %1644 = vmatpush.msra.mxu0 0.0
    %1645 = vmatpush.msra.mxu0 0.0
    %1646 = vmatpush.msra.mxu0 0.0
    %1647 = vmatpush.msra.mxu0 0.0
    %1648 = vmatpush.msra.mxu0 0.0
    %1649 = vmatpush.msra.mxu0 0.0
    %1650 = vmatpush.msra.mxu0 0.0
    %1651 = vmatpush.msra.mxu0 0.0
    %1652 = vmatpush.msra.mxu0 0.0
    %1653 = vmatpush.msra.mxu0 0.0
    %1654 = vmatpush.msra.mxu0 0.0
    %1655 = vmatpush.msra.mxu0 0.0
    %1656 = vmatpush.msra.mxu0 %v1633
    %1657 = vmatpush.msra.mxu0 %v1631
    %1658 = vmatmul.f32.gmra.mxu0 %v1637
    %v1659 = vpop.f32.mrf.mxu0
    %v1660 = vadd.f32 0.0, %v1659
    %1661 = vmatmul.f32.gmra.mxu0 %v1640
    %v1662 = vpop.f32.mrf.mxu0
    %v1663 = vadd.f32 0.0, %v1662
    %1664 = vdwg.mxu0
    %1667 = vrot.lane.b32.xlu0 %v1460, 8
    %v1668 = vpop.permute.xlu0 %1667
    %1669 = vrot.lane.b32.xlu0 %v1463, 8
    %v1670 = vpop.permute.xlu0 %1669
    %1675 = vrot.lane.b32.xlu0 %v1560, 16
    %v1676 = vpop.permute.xlu0 %1675
    %1677 = vrot.lane.b32.xlu0 %v1563, 16
    %v1678 = vpop.permute.xlu0 %1677
    %1683 = vrot.lane.b32.xlu0 %v1660, 24
    %v1684 = vpop.permute.xlu0 %1683
    %1685 = vrot.lane.b32.xlu0 %v1663, 24
    %v1686 = vpop.permute.xlu0 %1685
    %v1689 = vsel %vm327, %v1358, %v1668
    %v1690 = vsel %vm327, %v1361, %v1670
    %v1691 = vsel %vm367, %v1689, %v1676
    %v1692 = vsel %vm367, %v1690, %v1678
    %v1693 = vsel %vm749, %v1691, %v1684
    %v1694 = vsel %vm749, %v1692, %v1686
    %v1695 = vsel %vm752, %v1693, 0.0
    %v1696 = vsel %vm752, %v1694, 0.0
    %v1697 = vpack.c.bf16 %v1696, %v1695
    %v1698 = vperm.slane %v1091, 3
    %v1699 = vunpack.c.h.b16 %v1043
    %v1700 = vunpack.c.h.b16 %v1046
    %v1701 = vunpack.c.h.b16 %v1049
    %v1702 = vunpack.c.h.b16 %v1052
    %v1703 = vunpack.c.h.b16 %v1055
    %v1704 = vunpack.c.h.b16 %v1058
    %v1705 = vunpack.c.h.b16 %v1061
    %v1706 = vunpack.c.h.b16 %v1064
    %v1707 = vunpack.c.h.b16 %v1067
    %v1708 = vunpack.c.h.b16 %v1070
    %v1709 = vunpack.c.h.b16 %v1073
    %v1710 = vunpack.c.h.b16 %v1076
    %v1711 = vunpack.c.h.b16 %v1079
    %v1712 = vunpack.c.h.b16 %v1082
    %v1713 = vunpack.c.h.b16 %v1085
    %v1714 = vunpack.c.h.b16 %v1088
    %v1715 = vpack.c.b16 %v1700, %v1699
    %v1716 = vpack.c.b16 %v1702, %v1701
    %v1717 = vpack.c.b16 %v1704, %v1703
    %v1718 = vpack.c.b16 %v1706, %v1705
    %v1719 = vpack.c.b16 %v1708, %v1707
    %v1720 = vpack.c.b16 %v1710, %v1709
    %v1721 = vpack.c.b16 %v1712, %v1711
    %v1722 = vpack.c.b16 %v1714, %v1713
    %1731 = vmatpush.bf16.msra.mxu0 %v1722
    %1732 = vmatpush.bf16.msra.mxu0 %v1721
    %1733 = vmatpush.bf16.msra.mxu0 %v1720
    %1734 = vmatpush.bf16.msra.mxu0 %v1719
    %1735 = vmatpush.bf16.msra.mxu0 %v1718
    %1736 = vmatpush.bf16.msra.mxu0 %v1717
    %1737 = vmatpush.bf16.msra.mxu0 %v1716
    %1738 = vmatpush.bf16.msra.mxu0 %v1715
    %1739 = vmatmul.bf16.gmra.mxu0 %v1697
    %v1740 = vpop.f32.mrf.mxu0
    %v1741 = vadd.f32 %v1698, %v1740
    %v1742 = vpop.f32.mrf.mxu0
    %v1743 = vadd.f32 %v1698, %v1742
    %1744 = vdwg.mxu0
    %v1745 = vadd.f32 %v1741, %v1039
    %v1746 = vadd.f32 %v1743, %v1040
    %1747 = vadd.xlane.f32.xlu0 %v1745
    %v1748 = vpop.xlane.xlu0 %1747
    %1749 = vadd.xlane.f32.xlu0 %v1746
    %v1750 = vpop.xlane.xlu0 %1749
    %v1751 = vmul.f32 %v1748, 0.03125
    %v1752 = vmul.f32 %v1750, 0.03125
    %v1753 = vmul.f32 %v1745, %v1745
    %v1754 = vmul.f32 %v1746, %v1746
    %1755 = vadd.xlane.f32.xlu0 %v1753
    %v1756 = vpop.xlane.xlu0 %1755
    %1757 = vadd.xlane.f32.xlu0 %v1754
    %v1758 = vpop.xlane.xlu0 %1757
    %v1759 = vmul.f32 %v1756, 0.03125
    %v1760 = vmul.f32 %v1758, 0.03125
    %v1761 = vmul.f32 %v1751, %v1751
    %v1762 = vmul.f32 %v1752, %v1752
    %v1763 = vsub.f32 %v1759, %v1761
    %v1764 = vsub.f32 %v1760, %v1762
    %v1765 = vmax.f32 %v1763, 0.0
    %v1766 = vmax.f32 %v1764, 0.0
    %v1767 = vsub.f32 %v1745, %v1751
    %v1768 = vsub.f32 %v1746, %v1752
    %v1769 = vadd.f32 %v1765, 1e-05
    %v1770 = vadd.f32 %v1766, 1e-05
    %v1771 = vrsqrt.pop %v1769
    %v1772 = vmul.f32 %v1771, %v1769
    %v1773 = vmul.f32 %v1772, %v1771
    %v1774 = vmul.f32 0.5, %v1773
    %v1775 = vsub.f32 1.5, %v1774
    %v1776 = vmul.f32 %v1771, %v1775
    %vm1777 = vweird.f32 %v1769
    %vm1778 = vweird.f32 %v1771
    %vm1779 = vmor %vm1777, %vm1778
    %v1780 = vsel %vm1779, %v1771, %v1776
    %v1781 = vrsqrt.pop %v1770
    %v1782 = vmul.f32 %v1781, %v1770
    %v1783 = vmul.f32 %v1782, %v1781
    %v1784 = vmul.f32 0.5, %v1783
    %v1785 = vsub.f32 1.5, %v1784
    %v1786 = vmul.f32 %v1781, %v1785
    %vm1787 = vweird.f32 %v1770
    %vm1788 = vweird.f32 %v1781
    %vm1789 = vmor %vm1787, %vm1788
    %v1790 = vsel %vm1789, %v1781, %v1786
    %v1791 = vmul.f32 %v1767, %v1780
    %v1792 = vmul.f32 %v1768, %v1790
    %v1793 = vperm.slane %v1091, 4
    %v1794 = vmul.f32 %v1791, %v1793
    %v1795 = vmul.f32 %v1792, %v1793
    %v1796 = vperm.slane %v1091, 5
    %v1797 = vadd.f32 %v1794, %v1796
    %v1798 = vadd.f32 %v1795, %v1796
    %v1799 = vpack.c.bf16 %v1798, %v1797
    %v1800 = vperm.slane %v1091, 6
    %v1817 = vunpack.c.l.b16 %v1044
    %v1818 = vunpack.c.l.b16 %v1047
    %v1819 = vunpack.c.l.b16 %v1050
    %v1820 = vunpack.c.l.b16 %v1053
    %v1821 = vunpack.c.l.b16 %v1056
    %v1822 = vunpack.c.l.b16 %v1059
    %v1823 = vunpack.c.l.b16 %v1062
    %v1824 = vunpack.c.l.b16 %v1065
    %v1825 = vunpack.c.l.b16 %v1068
    %v1826 = vunpack.c.l.b16 %v1071
    %v1827 = vunpack.c.l.b16 %v1074
    %v1828 = vunpack.c.l.b16 %v1077
    %v1829 = vunpack.c.l.b16 %v1080
    %v1830 = vunpack.c.l.b16 %v1083
    %v1831 = vunpack.c.l.b16 %v1086
    %v1832 = vunpack.c.l.b16 %v1089
    %v1833 = vpack.c.b16 %v1818, %v1817
    %v1834 = vpack.c.b16 %v1820, %v1819
    %v1835 = vpack.c.b16 %v1822, %v1821
    %v1836 = vpack.c.b16 %v1824, %v1823
    %v1837 = vpack.c.b16 %v1826, %v1825
    %v1838 = vpack.c.b16 %v1828, %v1827
    %v1839 = vpack.c.b16 %v1830, %v1829
    %v1840 = vpack.c.b16 %v1832, %v1831
    %1849 = vmatpush.bf16.msra.mxu0 %v1840
    %1850 = vmatpush.bf16.msra.mxu0 %v1839
    %1851 = vmatpush.bf16.msra.mxu0 %v1838
    %1852 = vmatpush.bf16.msra.mxu0 %v1837
    %1853 = vmatpush.bf16.msra.mxu0 %v1836
    %1854 = vmatpush.bf16.msra.mxu0 %v1835
    %1855 = vmatpush.bf16.msra.mxu0 %v1834
    %1856 = vmatpush.bf16.msra.mxu0 %v1833
    %1857 = vmatmul.bf16.gmra.mxu0 %v1799
    %v1858 = vpop.f32.mrf.mxu0
    %v1859 = vadd.f32 %v1800, %v1858
    %v1860 = vpop.f32.mrf.mxu0
    %v1861 = vadd.f32 %v1800, %v1860
    %1862 = vdwg.mxu0
    %v1863 = vmul.f32 %v1859, 0.5
    %v1864 = vmul.f32 %v1861, 0.5
    %v1865 = vmul.f32 %v1859, 0.044715
    %v1866 = vmul.f32 %v1861, 0.044715
    %v1867 = vmul.f32 %v1865, %v1859
    %v1868 = vmul.f32 %v1866, %v1861
    %v1869 = vmul.f32 %v1867, %v1859
    %v1870 = vmul.f32 %v1868, %v1861
    %v1871 = vadd.f32 %v1859, %v1869
    %v1872 = vadd.f32 %v1861, %v1870
    %v1873 = vmul.f32 %v1871, 0.7978846
    %v1874 = vmul.f32 %v1872, 0.7978846
    %v1875 = vtanh.pop %v1873
    %v1876 = vtanh.pop %v1874
    %v1877 = vadd.f32 %v1875, 1.0
    %v1878 = vadd.f32 %v1876, 1.0
    %v1879 = vmul.f32 %v1863, %v1877
    %v1880 = vmul.f32 %v1864, %v1878
    %v1881 = vpack.c.bf16 %v1880, %v1879
    %v1882 = vperm.slane %v1091, 7
    %v1883 = vunpack.c.h.b16 %v1044
    %v1884 = vunpack.c.h.b16 %v1047
    %v1885 = vunpack.c.h.b16 %v1050
    %v1886 = vunpack.c.h.b16 %v1053
    %v1887 = vunpack.c.h.b16 %v1056
    %v1888 = vunpack.c.h.b16 %v1059
    %v1889 = vunpack.c.h.b16 %v1062
    %v1890 = vunpack.c.h.b16 %v1065
    %v1891 = vunpack.c.h.b16 %v1068
    %v1892 = vunpack.c.h.b16 %v1071
    %v1893 = vunpack.c.h.b16 %v1074
    %v1894 = vunpack.c.h.b16 %v1077
    %v1895 = vunpack.c.h.b16 %v1080
    %v1896 = vunpack.c.h.b16 %v1083
    %v1897 = vunpack.c.h.b16 %v1086
    %v1898 = vunpack.c.h.b16 %v1089
    %v1899 = vpack.c.b16 %v1884, %v1883
    %v1900 = vpack.c.b16 %v1886, %v1885
    %v1901 = vpack.c.b16 %v1888, %v1887
    %v1902 = vpack.c.b16 %v1890, %v1889
    %v1903 = vpack.c.b16 %v1892, %v1891
    %v1904 = vpack.c.b16 %v1894, %v1893
    %v1905 = vpack.c.b16 %v1896, %v1895
    %v1906 = vpack.c.b16 %v1898, %v1897
    %1915 = vmatpush.bf16.msra.mxu0 %v1906
    %1916 = vmatpush.bf16.msra.mxu0 %v1905
    %1917 = vmatpush.bf16.msra.mxu0 %v1904
    %1918 = vmatpush.bf16.msra.mxu0 %v1903
    %1919 = vmatpush.bf16.msra.mxu0 %v1902
    %1920 = vmatpush.bf16.msra.mxu0 %v1901
    %1921 = vmatpush.bf16.msra.mxu0 %v1900
    %1922 = vmatpush.bf16.msra.mxu0 %v1899
    %1923 = vmatmul.bf16.gmra.mxu0 %v1881
    %v1924 = vpop.f32.mrf.mxu0
    %v1925 = vadd.f32 %v1882, %v1924
    %v1926 = vpop.f32.mrf.mxu0
    %v1927 = vadd.f32 %v1882, %v1926
    %1928 = vdwg.mxu0
    %v1929 = vadd.f32 %v1925, %v1797
    %v1930 = vadd.f32 %v1927, %v1798
    %1931 = vadd.xlane.f32.xlu0 %v1929
    %v1932 = vpop.xlane.xlu0 %1931
    %1933 = vadd.xlane.f32.xlu0 %v1930
    %v1934 = vpop.xlane.xlu0 %1933
    %v1935 = vmul.f32 %v1932, 0.03125
    %v1936 = vmul.f32 %v1934, 0.03125
    %v1937 = vmul.f32 %v1929, %v1929
    %v1938 = vmul.f32 %v1930, %v1930
    %1939 = vadd.xlane.f32.xlu0 %v1937
    %v1940 = vpop.xlane.xlu0 %1939
    %1941 = vadd.xlane.f32.xlu0 %v1938
    %v1942 = vpop.xlane.xlu0 %1941
    %v1943 = vmul.f32 %v1940, 0.03125
    %v1944 = vmul.f32 %v1942, 0.03125
    %v1945 = vmul.f32 %v1935, %v1935
    %v1946 = vmul.f32 %v1936, %v1936
    %v1947 = vsub.f32 %v1943, %v1945
    %v1948 = vsub.f32 %v1944, %v1946
    %v1949 = vmax.f32 %v1947, 0.0
    %v1950 = vmax.f32 %v1948, 0.0
    %v1951 = vsub.f32 %v1929, %v1935
    %v1952 = vsub.f32 %v1930, %v1936
    %v1953 = vadd.f32 %v1949, 1e-05
    %v1954 = vadd.f32 %v1950, 1e-05
    %v1955 = vrsqrt.pop %v1953
    %v1956 = vmul.f32 %v1955, %v1953
    %v1957 = vmul.f32 %v1956, %v1955
    %v1958 = vmul.f32 0.5, %v1957
    %v1959 = vsub.f32 1.5, %v1958
    %v1960 = vmul.f32 %v1955, %v1959
    %vm1961 = vweird.f32 %v1953
    %vm1962 = vweird.f32 %v1955
    %vm1963 = vmor %vm1961, %vm1962
    %v1964 = vsel %vm1963, %v1955, %v1960
    %v1965 = vrsqrt.pop %v1954
    %v1966 = vmul.f32 %v1965, %v1954
    %v1967 = vmul.f32 %v1966, %v1965
    %v1968 = vmul.f32 0.5, %v1967
    %v1969 = vsub.f32 1.5, %v1968
    %v1970 = vmul.f32 %v1965, %v1969
    %vm1971 = vweird.f32 %v1954
    %vm1972 = vweird.f32 %v1965
    %vm1973 = vmor %vm1971, %vm1972
    %v1974 = vsel %vm1973, %v1965, %v1970
    %v1975 = vmul.f32 %v1951, %v1964
    %v1976 = vmul.f32 %v1952, %v1974
    %v1977 = vperm.slane %v1092, 0
    %v1978 = vmul.f32 %v1975, %v1977
    %v1979 = vmul.f32 %v1976, %v1977
    %v1980 = vperm.slane %v1092, 1
    %v1981 = vadd.f32 %v1978, %v1980
    %v1982 = vadd.f32 %v1979, %v1980
    %v1983 = vld [vmem:[%s5] sm:$0xff]
    %v1984 = vld [vmem:[%s5 + $0x8] sm:$0xff]
    %v1985 = vld [vmem:[%s5 + $0x10] sm:$0xff]
    %v1986 = vld [vmem:[%s5 + $0x18] sm:$0xff]
    %v1987 = vld [vmem:[%s5 + $0x20] sm:$0xff]
    %v1988 = vld [vmem:[%s5 + $0x28] sm:$0xff]
    %v1989 = vld [vmem:[%s5 + $0x30] sm:$0xff]
    %v1990 = vld [vmem:[%s5 + $0x38] sm:$0xff]
    %v1991 = vld [vmem:[%s5 + $0x40] sm:$0xff]
    %v1992 = vld [vmem:[%s5 + $0x48] sm:$0xff]
    %v1993 = vld [vmem:[%s5 + $0x50] sm:$0xff]
    %v1994 = vld [vmem:[%s5 + $0x58] sm:$0xff]
    %v1995 = vld [vmem:[%s5 + $0x60] sm:$0xff]
    %v1996 = vld [vmem:[%s5 + $0x68] sm:$0xff]
    %v1997 = vld [vmem:[%s5 + $0x70] sm:$0xff]
    %v1998 = vld [vmem:[%s5 + $0x78] sm:$0xff]
    %v1999 = vpack.c.bf16 %v1981, %v1981
    %v2000 = vpack.c.bf16 %v1982, %v1982
    %v2001 = vperm.slane %v42, 2
    %v2004 = vunpack.c.l.b16 %v1999
    %v2005 = vunpack.c.l.b16 %v2000
    %v2006 = vrot.slane %v2005, 7
    %vm2007 = vcmask 1041409
    %v2008 = vsel %vm2007, %v2006, %v2004
    %v2009 = vpack.c.b16 %v2008, %v2008
    %v2027 = vunpack.c.l.b16 %v1983
    %v2028 = vunpack.c.l.b16 %v1984
    %v2029 = vunpack.c.l.b16 %v1985
    %v2030 = vunpack.c.l.b16 %v1986
    %v2031 = vunpack.c.l.b16 %v1987
    %v2032 = vunpack.c.l.b16 %v1988
    %v2033 = vunpack.c.l.b16 %v1989
    %v2034 = vunpack.c.l.b16 %v1990
    %v2035 = vunpack.c.l.b16 %v1991
    %v2036 = vunpack.c.l.b16 %v1992
    %v2037 = vunpack.c.l.b16 %v1993
    %v2038 = vunpack.c.l.b16 %v1994
    %v2039 = vunpack.c.l.b16 %v1995
    %v2040 = vunpack.c.l.b16 %v1996
    %v2041 = vunpack.c.l.b16 %v1997
    %v2042 = vunpack.c.l.b16 %v1998
    %v2043 = vpack.c.b16 %v2028, %v2027
    %v2044 = vpack.c.b16 %v2030, %v2029
    %v2045 = vpack.c.b16 %v2032, %v2031
    %v2046 = vpack.c.b16 %v2034, %v2033
    %v2047 = vpack.c.b16 %v2036, %v2035
    %v2048 = vpack.c.b16 %v2038, %v2037
    %v2049 = vpack.c.b16 %v2040, %v2039
    %v2050 = vpack.c.b16 %v2042, %v2041
    %2059 = vmatpush.bf16.msra.mxu0 %v2050
    %2060 = vmatpush.bf16.msra.mxu0 %v2049
    %2061 = vmatpush.bf16.msra.mxu0 %v2048
    %2062 = vmatpush.bf16.msra.mxu0 %v2047
    %2063 = vmatpush.bf16.msra.mxu0 %v2046
    %2064 = vmatpush.bf16.msra.mxu0 %v2045
    %2065 = vmatpush.bf16.msra.mxu0 %v2044
    %2066 = vmatpush.bf16.msra.mxu0 %v2043
    %2067 = vmatmul.bf16.gmra.mxu0 %v2009
    %v2068 = vpop.f32.mrf.mxu0
    %v2069 = vadd.f32 %v2001, %v2068
    %v2070 = vpop.f32.mrf.mxu0
    %2071 = vdwg.mxu0
    %v2072 = vtanh.pop %v2069
    %v2073 = vpack.c.bf16 %v2072, %v2072
    %v2074 = vperm.slane %v42, 3
    %v2075 = vunpack.c.h.b16 %v1983
    %v2076 = vunpack.c.h.b16 %v1984
    %v2077 = vunpack.c.h.b16 %v1985
    %v2078 = vunpack.c.h.b16 %v1986
    %v2079 = vunpack.c.h.b16 %v1987
    %v2080 = vunpack.c.h.b16 %v1988
    %v2081 = vunpack.c.h.b16 %v1989
    %v2082 = vunpack.c.h.b16 %v1990
    %v2083 = vunpack.c.h.b16 %v1991
    %v2084 = vunpack.c.h.b16 %v1992
    %v2085 = vunpack.c.h.b16 %v1993
    %v2086 = vunpack.c.h.b16 %v1994
    %v2087 = vunpack.c.h.b16 %v1995
    %v2088 = vunpack.c.h.b16 %v1996
    %v2089 = vunpack.c.h.b16 %v1997
    %v2090 = vunpack.c.h.b16 %v1998
    %v2091 = vpack.c.b16 %v2076, %v2075
    %v2092 = vpack.c.b16 %v2078, %v2077
    %v2093 = vpack.c.b16 %v2080, %v2079
    %v2094 = vpack.c.b16 %v2082, %v2081
    %v2095 = vpack.c.b16 %v2084, %v2083
    %v2096 = vpack.c.b16 %v2086, %v2085
    %v2097 = vpack.c.b16 %v2088, %v2087
    %v2098 = vpack.c.b16 %v2090, %v2089
    %2107 = vmatpush.bf16.msra.mxu0 %v2098
    %2108 = vmatpush.bf16.msra.mxu0 %v2097
    %2109 = vmatpush.bf16.msra.mxu0 %v2096
    %2110 = vmatpush.bf16.msra.mxu0 %v2095
    %2111 = vmatpush.bf16.msra.mxu0 %v2094
    %2112 = vmatpush.bf16.msra.mxu0 %v2093
    %2113 = vmatpush.bf16.msra.mxu0 %v2092
    %2114 = vmatpush.bf16.msra.mxu0 %v2091
    %2115 = vmatmul.bf16.gmra.mxu0 %v2073
    %v2116 = vpop.f32.mrf.mxu0
    %v2117 = vadd.f32 %v2074, %v2116
    %v2118 = vpop.f32.mrf.mxu0
    %2119 = vdwg.mxu0
    %2120 = vst [vmem:[#allocation5] sm:$0x3] %v2117
    // Predicated region
    $region30: #{roberta_classifier.1} parent=1 // pred_check
      _
    $region31: #{roberta_classifier.1} parent=1 // pred_check_branch
      %2122 = sbr.rel (0) target = $region33
    $region32: #{roberta_classifier.1} parent=1 // pred_region
      %2124 = vsyncadd [#allocation4], 0
      %s2126 = sshll.u32 [#allocation5], 4
      %s2127 = int_to_ptr.vmem [resolvable:$true] %s2126
      %s2128 = sshll.u32 %s6, 4
      %s2129 = int_to_ptr.hbm [resolvable:$true] %s2128
      %2131 = dma.vmem_to_hbm [thread:$0]  %s2127, 32, %s2129, [#allocation4]
    $region33: #{roberta_classifier.1} parent=1 // pred_fallthru
      _
    // Predicated region
    $region34: #{roberta_classifier.1} parent=1 // pred_check
      _
    $region35: #{roberta_classifier.1} parent=1 // pred_check_branch
      %2133 = sbr.rel (0) target = $region37
    $region36: #{roberta_classifier.1} parent=1 // pred_region
      %2135 = dma.done [#allocation4], 32
    $region37: #{roberta_classifier.1} parent=1 // pred_fallthru
      _
    %2136 = vsyncpa [#allocation3], 1
    %2137 = vsyncpa [#allocation4], 1

</llo_original>
